<compile_context>
chip_gen: v7x
topology: tpu7x:2x2x1
jax: 0.10.0
libtpu: 0.0.40
codegen_flags: <defaults>
</compile_context>

<pallas_src>
import functools

import jax
import jax.numpy as jnp
from jax.experimental import pallas as pl
from jax.experimental.pallas import tpu as pltpu

EPS = 1e-5


def _cdiv(a, b):
    return (a + b - 1) // b


def _round_up(a, b):
    return _cdiv(a, b) * b


def _vmem_bytes_estimate(tr, *, cin, cout_t, wr, h_halo, kh, kw, cb, ob):
    """Rough per-grid-step VMEM estimate (double-buffered blocks + in-kernel temps)."""
    tl = tr * wr
    hbl = h_halo * wr
    span = tl + (kh - 1) * wr
    xa = cin * tl * cb                       # main input rows block
    xb = cin * hbl * cb                      # halo rows block
    w = kh * cout_t * kw * cin * cb          # folded weights block
    b = cout_t * 4                           # folded bias block
    out = cout_t * tl * ob                   # output block
    pipe = 2 * (xa + xb + w + b + out)       # double-buffered pipeline buffers
    temps = cin * (tl + hbl) * cb            # window concat
    temps += kw * cin * span * cb            # hoisted kw-shifted stacked slabs
    temps += cout_t * tl * 4                 # f32 accumulator
    return pipe + temps


def _pick_row_tile(h, *, budget, cin, cout_t, wr, h_halo, kh, kw, cb, ob):
    """Largest row tile (multiple of h_halo, capped at the image) within the VMEM budget."""
    h_cap = _round_up(max(h, 1), h_halo)
    tr = h_halo
    while (tr + h_halo <= h_cap and
           _vmem_bytes_estimate(tr + h_halo, cin=cin, cout_t=cout_t, wr=wr,
                                h_halo=h_halo, kh=kh, kw=kw, cb=cb, ob=ob) <= budget):
        tr += h_halo
    return tr


def _conv_bn_act_kernel(xa_ref, xb_ref, w_ref, b_ref, o_ref, *, kh_taps, kw_taps, wr, tl):
    # xa_ref: (1, Cin, TL)          main input rows for this row tile (compute dtype)
    # xb_ref: (1, Cin, HBL)         halo rows immediately below the tile
    # w_ref : (KH, Cout_t, KW*Cin)  BN-folded weights, contraction stacked over (kw, cin)
    # b_ref : (Cout_t, 1)           BN-folded bias (f32)
    # o_ref : (1, Cout_t, TL)       lane-dense padded-grid output tile (lane axis = rows*Wr)
    window = jnp.concatenate([xa_ref[0], xb_ref[0]], axis=-1)        # (Cin, TL + HBL)

    # Hoist the KW column-shifted slabs once (the only unaligned lane shifts), stack them
    # along the contraction dim; the kh offsets below are 128-aligned lane-block slices.
    span = tl + (kh_taps - 1) * wr
    slabs = [window[:, kw:kw + span] for kw in range(kw_taps)]        # KW x (Cin, span)
    vstack = slabs[0] if kw_taps == 1 else jnp.concatenate(slabs, axis=0)   # (KW*Cin, span)

    acc = None
    for kh in range(kh_taps):          # static, fully unrolled: KH matmuls with K = KW*Cin
        v = vstack[:, kh * wr:kh * wr + tl]                           # 128-aligned slice
        part = jnp.dot(w_ref[kh], v, preferred_element_type=jnp.float32)   # (Cout_t, TL)
        acc = part if acc is None else acc + part
    y = acc + b_ref[...]               # folded conv+BN bias, lane broadcast
    y = jnp.maximum(y, 0.0)            # activation (ReLU)
    o_ref[0] = y.astype(o_ref.dtype)


def norm_activation_wrapper_forward(
        x_nchw, weight, bias, gamma, beta, run_mean, run_var, *,
        compute_dtype=jnp.bfloat16, out_dtype=None, cout_tile=256,
        vmem_budget_bytes=36 * 1024 * 1024, vmem_limit_bytes=48 * 1024 * 1024):
    """x_nchw: (N, Cin, H, W); weight: (Cout, Cin, KH, KW) torch OIHW layout.

    Implements ReLU(BatchNorm2d_eval(Conv2d_same(x))).  stride=1, dilation=1, odd kernel.
    """
    N, Cin, H, W = x_nchw.shape
    Cout, Cin_w, KH, KW = weight.shape
    if Cin_w != Cin:
        raise ValueError("input/weight channel mismatch")
    if KH % 2 != 1 or KW % 2 != 1:
        raise ValueError("odd kernel sizes only (SAME padding, stride=1, dilation=1)")
    if cout_tile % 8 != 0:
        raise ValueError("cout_tile must be a multiple of 8")
    ph, pw = KH // 2, KW // 2
    out_dtype = x_nchw.dtype if out_dtype is None else out_dtype

    # ---- fold eval-mode BatchNorm2d into the conv weight / bias (trace-time constants) ----
    scale = gamma * jax.lax.rsqrt(run_var + EPS)                     # (Cout,)
    w_fold = weight * scale[:, None, None, None]                     # (Cout, Cin, KH, KW)
    b_fold = (bias - run_mean) * scale + beta                        # (Cout,)

    # ---- Cout tiling (weights stay resident along the row-tile axis) ----
    ct = Cout if Cout <= cout_tile else cout_tile
    n_ct = _cdiv(Cout, ct)
    Cout_p = n_ct * ct

    # ---- padded, 128-multiple-pitch row layout ----
    Wr = _round_up(W + 2 * pw, 128)          # row pitch: 128-aligned kh offsets
    h_halo = KH                              # 2*ph+1 rows: row halo + the +/-pw column spill
    cb = jnp.dtype(compute_dtype).itemsize
    ob = jnp.dtype(out_dtype).itemsize
    tr = _pick_row_tile(H, budget=vmem_budget_bytes, cin=Cin, cout_t=ct, wr=Wr,
                        h_halo=h_halo, kh=KH, kw=KW, cb=cb, ob=ob)
    Hc = _round_up(H, tr)                    # output rows, padded to the row tile
    n_rt = Hc // tr
    R_tot = Hc + h_halo                      # stored input rows (top/bottom zero halo incl.)
    TL, HBL = tr * Wr, h_halo * Wr
    tr_over_halo = tr // h_halo              # exact by construction

    # Single fused pad+cast pass builds the zero halo; the reshape is free (contiguous).
    # x_host[rr, cc] = x_in[rr - ph, cc - pw]  (zero outside), so every tap offset is >= 0.
    x_host = jnp.pad(x_nchw, ((0, 0), (0, 0), (ph, R_tot - H - ph), (pw, Wr - W - pw)))
    x_flat = x_host.astype(compute_dtype).reshape(N, Cin, R_tot * Wr)

    # per-kh weight slabs, contraction dim ordered (kw major, cin minor) to match the kernel
    w_k = jnp.transpose(w_fold, (2, 0, 3, 1)).reshape(KH, Cout, KW * Cin)
    if Cout_p > Cout:
        w_k = jnp.pad(w_k, ((0, 0), (0, Cout_p - Cout), (0, 0)))
        b_fold = jnp.pad(b_fold, (0, Cout_p - Cout))
    w_k = w_k.astype(compute_dtype)
    b_col = b_fold.reshape(Cout_p, 1).astype(jnp.float32)

    kernel = functools.partial(_conv_bn_act_kernel, kh_taps=KH, kw_taps=KW, wr=Wr, tl=TL)

    y_flat = pl.pallas_call(
        kernel,
        out_shape=jax.ShapeDtypeStruct((N, Cout_p, Hc * Wr), out_dtype),
        grid=(N, n_ct, n_rt),
        in_specs=[
            # main rows of the current tile
            pl.BlockSpec((1, Cin, TL), lambda n, c, t: (n, 0, t)),
            # small halo block just below the tile (same array, 128-aligned block)
            pl.BlockSpec((1, Cin, HBL), lambda n, c, t: (n, 0, (t + 1) * tr_over_halo)),
            # folded weights / bias: resident across the row-tile axis
            pl.BlockSpec((KH, ct, KW * Cin), lambda n, c, t: (0, c, 0)),
            pl.BlockSpec((ct, 1), lambda n, c, t: (c, 0)),
        ],
        out_specs=pl.BlockSpec((1, ct, TL), lambda n, c, t: (n, c, t)),
        compiler_params=pltpu.CompilerParams(
            dimension_semantics=("parallel", "parallel", "parallel"),
            vmem_limit_bytes=vmem_limit_bytes),
    )(x_flat, x_flat, w_k, b_col)

    # Output is channel-major with a row-major (Hc, Wr) padded grid per channel; crop it.
    y = y_flat.reshape(N, Cout_p, Hc, Wr)[:, :Cout, :H, :W]
    return y


def _reference(x, w, b, gamma, beta, mean, var):
    y = jax.lax.conv_general_dilated(
        x, w, window_strides=(1, 1), padding="SAME",
        dimension_numbers=("NCHW", "OIHW", "NCHW"))
    y = y + b[None, :, None, None]
    inv = jax.lax.rsqrt(var + EPS)
    y = (y - mean[None, :, None, None]) * (gamma * inv)[None, :, None, None] \
        + beta[None, :, None, None]
    return jnp.maximum(y, 0.0)                                        # ReLU activation


if __name__ == "__main__":
    N, Cin, Cout, H, W = 2, 4, 8, 16, 16
    KH = KW = 3

    key = jax.random.PRNGKey(0)
    k_x, k_w, k_b, k_g, k_be, k_m, k_v = jax.random.split(key, 7)

    x = jax.random.normal(k_x, (N, Cin, H, W), dtype=jnp.float32)
    weight = jax.random.normal(k_w, (Cout, Cin, KH, KW), dtype=jnp.float32) * 0.1
    bias = jax.random.normal(k_b, (Cout,), dtype=jnp.float32) * 0.1
    gamma = 1.0 + 0.1 * jax.random.normal(k_g, (Cout,), dtype=jnp.float32)
    beta = 0.1 * jax.random.normal(k_be, (Cout,), dtype=jnp.float32)
    run_mean = 0.1 * jax.random.normal(k_m, (Cout,), dtype=jnp.float32)
    run_var = jnp.abs(jax.random.normal(k_v, (Cout,), dtype=jnp.float32)) + 0.5

    y_ref = _reference(x, weight, bias, gamma, beta, run_mean, run_var)

    # 1) f32 compute path, single row tile (default VMEM budget): tight check vs reference.
    y_f32 = norm_activation_wrapper_forward(
        x, weight, bias, gamma, beta, run_mean, run_var, compute_dtype=jnp.float32)
    y_f32 = jax.block_until_ready(y_f32)
    assert y_f32.shape == (N, Cout, H, W)
    assert jnp.allclose(y_f32, y_ref, atol=1e-4, rtol=1e-4), "f32 mismatch vs reference"

    # 2) f32 compute path forced onto many small row tiles (exercises halo blocks / tiling).
    y_tiled = norm_activation_wrapper_forward(
        x, weight, bias, gamma, beta, run_mean, run_var,
        compute_dtype=jnp.float32, vmem_budget_bytes=1)
    y_tiled = jax.block_until_ready(y_tiled)
    assert y_tiled.shape == (N, Cout, H, W)
    assert jnp.allclose(y_tiled, y_ref, atol=1e-4, rtol=1e-4), "tiled f32 mismatch"

    # 3) bf16 compute path with bf16 output (MXU fast path; halves output HBM writeback).
    y_bf16 = norm_activation_wrapper_forward(
        x, weight, bias, gamma, beta, run_mean, run_var,
        compute_dtype=jnp.bfloat16, out_dtype=jnp.bfloat16)
    y_bf16 = jax.block_until_ready(y_bf16)
    assert y_bf16.shape == (N, Cout, H, W)
    assert jnp.allclose(y_bf16.astype(jnp.float32), y_ref, atol=1e-1, rtol=1e-1), \
        "bf16 mismatch vs reference"

    print("KERNEL_OK")
</pallas_src>

<mosaic_0001>
module attributes {stable_mosaic.version = 11 : i64} {
  func.func @_conv_bn_act_kernel(%arg0: i32, %arg1: i32, %arg2: i32, %arg3: memref<1x4x2304xf32, #tpu.memory_space<vmem>>, %arg4: memref<1x4x384xf32, #tpu.memory_space<vmem>>, %arg5: memref<3x8x12xf32, #tpu.memory_space<vmem>>, %arg6: memref<8x1xf32, #tpu.memory_space<vmem>>, %arg7: memref<1x8x2304xf32, #tpu.memory_space<vmem>>) attributes {dimension_semantics = [#tpu.dimension_semantics<parallel>, #tpu.dimension_semantics<parallel>, #tpu.dimension_semantics<parallel>], iteration_bounds = array<i64: 2, 1, 1>, scalar_prefetch = 0 : i64, scratch_operands = 0 : i64, tpu.core_type = #tpu.core_type<tc>, window_params = [{transform_indices = @transform_0, window_bounds = array<i64: 1, 4, 2304>}, {transform_indices = @transform_1, window_bounds = array<i64: 1, 4, 384>}, {transform_indices = @transform_2, window_bounds = array<i64: 3, 8, 12>}, {transform_indices = @transform_3, window_bounds = array<i64: 8, 1>}, {transform_indices = @transform_4, window_bounds = array<i64: 1, 8, 2304>}]} {
    %c0 = arith.constant 0 : index
    %c0_0 = arith.constant 0 : index
    %c0_1 = arith.constant 0 : index
    %0 = vector.load %arg3[%c0, %c0_0, %c0_1] : memref<1x4x2304xf32, #tpu.memory_space<vmem>>, vector<1x4x2304xf32>
    %1 = vector.shape_cast %0 : vector<1x4x2304xf32> to vector<4x2304xf32>
    %c0_2 = arith.constant 0 : index
    %c0_3 = arith.constant 0 : index
    %c0_4 = arith.constant 0 : index
    %2 = vector.load %arg4[%c0_2, %c0_3, %c0_4] : memref<1x4x384xf32, #tpu.memory_space<vmem>>, vector<1x4x384xf32>
    %3 = vector.shape_cast %2 : vector<1x4x384xf32> to vector<4x384xf32>
    %4 = tpu.concatenate %1, %3 in 1 : vector<4x2304xf32>, vector<4x384xf32> -> vector<4x2688xf32>
    %5 = vector.extract_strided_slice %4 {offsets = [0, 0], sizes = [4, 2560], strides = [1, 1]} : vector<4x2688xf32> to vector<4x2560xf32>
    %6 = vector.extract_strided_slice %4 {offsets = [0, 1], sizes = [4, 2560], strides = [1, 1]} : vector<4x2688xf32> to vector<4x2560xf32>
    %7 = vector.extract_strided_slice %4 {offsets = [0, 2], sizes = [4, 2560], strides = [1, 1]} : vector<4x2688xf32> to vector<4x2560xf32>
    %8 = tpu.concatenate %5, %6, %7 in 0 : vector<4x2560xf32>, vector<4x2560xf32>, vector<4x2560xf32> -> vector<12x2560xf32>
    %9 = vector.extract_strided_slice %8 {offsets = [0, 0], sizes = [12, 2304], strides = [1, 1]} : vector<12x2560xf32> to vector<12x2304xf32>
    %c0_5 = arith.constant 0 : index
    %c0_6 = arith.constant 0 : index
    %c0_7 = arith.constant 0 : index
    %10 = vector.load %arg5[%c0_5, %c0_6, %c0_7] : memref<3x8x12xf32, #tpu.memory_space<vmem>>, vector<1x8x12xf32>
    %11 = vector.shape_cast %10 : vector<1x8x12xf32> to vector<8x12xf32>
    %cst = arith.constant dense<0.000000e+00> : vector<8x2304xf32>
    %12 = tpu.matmul %11, %9, %cst {dimension_numbers = #tpu.dot_dimension_numbers<[1], [0], [0], [1], [0, 0, 1, 1], [], []>} : vector<8x12xf32>, vector<12x2304xf32>, vector<8x2304xf32> -> vector<8x2304xf32>
    %13 = vector.extract_strided_slice %8 {offsets = [0, 128], sizes = [12, 2304], strides = [1, 1]} : vector<12x2560xf32> to vector<12x2304xf32>
    %c1 = arith.constant 1 : index
    %c0_8 = arith.constant 0 : index
    %c0_9 = arith.constant 0 : index
    %14 = vector.load %arg5[%c1, %c0_8, %c0_9] : memref<3x8x12xf32, #tpu.memory_space<vmem>>, vector<1x8x12xf32>
    %15 = vector.shape_cast %14 : vector<1x8x12xf32> to vector<8x12xf32>
    %cst_10 = arith.constant dense<0.000000e+00> : vector<8x2304xf32>
    %16 = tpu.matmul %15, %13, %cst_10 {dimension_numbers = #tpu.dot_dimension_numbers<[1], [0], [0], [1], [0, 0, 1, 1], [], []>} : vector<8x12xf32>, vector<12x2304xf32>, vector<8x2304xf32> -> vector<8x2304xf32>
    %17 = arith.addf %12, %16 : vector<8x2304xf32>
    %18 = vector.extract_strided_slice %8 {offsets = [0, 256], sizes = [12, 2304], strides = [1, 1]} : vector<12x2560xf32> to vector<12x2304xf32>
    %c2 = arith.constant 2 : index
    %c0_11 = arith.constant 0 : index
    %c0_12 = arith.constant 0 : index
    %19 = vector.load %arg5[%c2, %c0_11, %c0_12] : memref<3x8x12xf32, #tpu.memory_space<vmem>>, vector<1x8x12xf32>
    %20 = vector.shape_cast %19 : vector<1x8x12xf32> to vector<8x12xf32>
    %cst_13 = arith.constant dense<0.000000e+00> : vector<8x2304xf32>
    %21 = tpu.matmul %20, %18, %cst_13 {dimension_numbers = #tpu.dot_dimension_numbers<[1], [0], [0], [1], [0, 0, 1, 1], [], []>} : vector<8x12xf32>, vector<12x2304xf32>, vector<8x2304xf32> -> vector<8x2304xf32>
    %22 = arith.addf %17, %21 : vector<8x2304xf32>
    %c0_14 = arith.constant 0 : index
    %c0_15 = arith.constant 0 : index
    %23 = vector.load %arg6[%c0_14, %c0_15] : memref<8x1xf32, #tpu.memory_space<vmem>>, vector<8x1xf32>
    %24 = vector.broadcast %23 : vector<8x1xf32> to vector<8x2304xf32>
    %25 = arith.addf %22, %24 : vector<8x2304xf32>
    %cst_16 = arith.constant 0.000000e+00 : f32
    %26 = vector.broadcast %cst_16 : f32 to vector<8x2304xf32>
    %27 = arith.maximumf %25, %26 : vector<8x2304xf32>
    %c0_17 = arith.constant 0 : index
    %c0_18 = arith.constant 0 : index
    %c0_19 = arith.constant 0 : index
    %28 = vector.load %arg7[%c0_17, %c0_18, %c0_19] : memref<1x8x2304xf32, #tpu.memory_space<vmem>>, vector<1x8x2304xf32>
    %29 = vector.shape_cast %28 : vector<1x8x2304xf32> to vector<8x2304xf32>
    %30 = vector.shape_cast %27 : vector<8x2304xf32> to vector<1x8x2304xf32>
    tpu.vector_store %arg7[%c0_17, %c0_18, %c0_19], %30 {strides = array<i32>} : memref<1x8x2304xf32, #tpu.memory_space<vmem>>, vector<1x8x2304xf32>,
    return
  }
  func.func @transform_0(%arg0: i32, %arg1: i32, %arg2: i32) -> (i32, i32, i32) {
    %c0_i32 = arith.constant 0 : i32
    %c0_i32_0 = arith.constant 0 : i32
    return %arg0, %c0_i32, %arg2 : i32, i32, i32
  }
  func.func @transform_1(%arg0: i32, %arg1: i32, %arg2: i32) -> (i32, i32, i32) {
    %c1_i32 = arith.constant 1 : i32
    %0 = arith.addi %arg2, %c1_i32 : i32
    %c6_i32 = arith.constant 6 : i32
    %1 = arith.muli %0, %c6_i32 : i32
    %c0_i32 = arith.constant 0 : i32
    %c0_i32_0 = arith.constant 0 : i32
    return %arg0, %c0_i32, %1 : i32, i32, i32
  }
  func.func @transform_2(%arg0: i32, %arg1: i32, %arg2: i32) -> (i32, i32, i32) {
    %c0_i32 = arith.constant 0 : i32
    %c0_i32_0 = arith.constant 0 : i32
    %c0_i32_1 = arith.constant 0 : i32
    return %c0_i32, %arg1, %c0_i32_0 : i32, i32, i32
  }
  func.func @transform_3(%arg0: i32, %arg1: i32, %arg2: i32) -> (i32, i32) {
    %c0_i32 = arith.constant 0 : i32
    %c0_i32_0 = arith.constant 0 : i32
    return %arg1, %c0_i32 : i32, i32
  }
  func.func @transform_4(%arg0: i32, %arg1: i32, %arg2: i32) -> (i32, i32, i32) {
    %c0_i32 = arith.constant 0 : i32
    return %arg0, %arg1, %arg2 : i32, i32, i32
  }
}

</mosaic_0001>

<llo_original>
// kernel: tpu_custom_call.1
$region0: #{tpu_custom_call.1}
  #allocation0 [shape = 'u32[]', space=smem, size = 0x4, offset = 0x4, fixed_abs, tag = 'smem constant byte address 0x4 - core index']
  #allocation1 [shape = 'u32[144,128]{1,0:T(1,128)}', space=vmem, size = 0x12000, scoped, tag = 'internal scratch']
  %s0 = inlined_call_operand.hbm [shape: f32[2,4,2688], index: 0, kind: input, shape index: {}]
  %s1 = inlined_call_operand.hbm [shape: f32[2,4,2688], index: 1, kind: input, shape index: {}]
  %s2 = inlined_call_operand.hbm [shape: f32[3,8,12], index: 2, kind: input, shape index: {}]
  %s3 = inlined_call_operand.vmem [shape: f32[8,1], index: 3, kind: input, shape index: {}]
  %s4 = inlined_call_operand.hbm [shape: f32[2,8,2304], index: 4, kind: output, shape index: {}]
  %s5 = sld [smem:[#allocation0]]
  $region61: #{tpu_custom_call.1} parent=0
    _
  %s7 = ssub.s32 1, %s5
  %s8 = scalar_select 0, %s7, %s5
  $region1: #{tpu_custom_call.1} parent=0
    #allocation2 [shape = 'u8[73728]{0}', space=vmem, size = 0x12000, scoped, tag = 'input window, operand 0']
    #allocation3 [shape = 's32[2]{0}', space=sflag, size = 0x8, scoped, tag = 'scoped memory for tpu_custom_call.1']
    #allocation4 [shape = 's32[2]{0}', space=sflag, size = 0x8, scoped, tag = 'scoped memory for tpu_custom_call.1']
    #allocation5 [shape = 'u8[12288]{0}', space=vmem, size = 0x3000, scoped, tag = 'input window, operand 1']
    #allocation6 [shape = 's32[2]{0}', space=sflag, size = 0x8, scoped, tag = 'scoped memory for tpu_custom_call.1']
    #allocation7 [shape = 'u8[12288]{0}', space=vmem, size = 0x3000, scoped, tag = 'input window, operand 2, single buffered']
    #allocation8 [shape = 'u8[147456]{0}', space=vmem, size = 0x24000, scoped, tag = 'output window, operand 0']
    %9 = vsyncpa [#allocation3], 0
    %s10 = scalar_lea.sflag [#allocation3], 1
    %11 = vsyncpa %s10, 0
    %12 = vsyncpa [#allocation6], 0
    %s13 = scalar_lea.sflag [#allocation6], 1
    %14 = vsyncpa %s13, 0
    %15 = vsyncpa [#allocation4], 0
    %s16 = scalar_lea.sflag [#allocation4], 1
    %17 = vsyncpa %s16, 0
    loop: start=0, step=1, limit=4
    $region2: #{tpu_custom_call.1} parent=1 // loop_pre_header
      _
    $region3: #{tpu_custom_call.1} parent=1 // loop_header
      %s19 = sphi 0, %s23
      %p20 = scmp.ge.s32.totalorder %s19, 4
      %s26 = sphi 0, %s45
      %s27 = sphi 0, %s41
      %s28 = sphi 0, %s37
      %s29 = sphi 0, %s26
      %s30 = sphi 0, %s27
      %s31 = sphi 0, %s28
      %s32 = sphi 0, %s29
      %s33 = sphi 0, %s30
      %s34 = sphi 0, %s31
      %s50 = sphi 0, %s52
      %s53 = sphi 0, %s50
      %s54 = sphi 0, %s53
      %s70 = sphi 0, %s54
      %s82 = sphi 0, %s84
      %s85 = sphi 0, %s82
      %s86 = sphi 0, %s85
      %s102 = sphi 0, %s86
      %s108 = sphi 0, %s110
      %s111 = sphi 0, %s108
      %s112 = sphi 0, %s111
      %s128 = sphi 0, %s112
      %s134 = sphi 0, %s136
      %s137 = sphi 0, %s134
      %s138 = sphi 0, %s137
      %s154 = sphi 0, %s138
      %s164 = sphi 0, %s166
      %s167 = sphi 0, %s164
      %s168 = sphi 0, %s167
      %s184 = sphi 0, %s168
    $region4: #{tpu_custom_call.1} parent=1 // loop_header_branch
      %22 = sbr.rel (%p20) target = $region8
    $region5: #{tpu_custom_call.1} parent=1 // loop_body
      %s24 = ssub.s32 %s19, 1
      %s25 = ssub.s32 %s19, 2
      %s35 = sadd.s32 1, %s28
      %p36 = scmp.ge.s32.totalorder %s35, 1
      %s37 = scalar_select %p36, 0, %s35
      %s38 = sadd.s32 1, %s27
      %s39 = scalar_select %p36, %s38, %s27
      %p40 = scmp.ge.s32.totalorder %s39, 1
      %s41 = scalar_select %p40, 0, %s39
      %s42 = sadd.s32 1, %s26
      %s43 = scalar_select %p40, %s42, %s26
      %p44 = scmp.ge.s32.totalorder %s43, 2
      %s45 = scalar_select %p44, 0, %s43
      %s46 = ssub.s32 %s26, %s45
      %s47 = ssub.s32 %s28, %s37
      %s48 = sor.u32 %s46, %s47
      %p49 = scmp.eq.s32.totalorder %s48, 0
      %s51 = sadd.s32 %s50, 1
      %s52 = scalar_select %p49, %s50, %s51
      %p55 = pneg %p49
      %p56 = scmp.eq.s32.totalorder %s19, 1
      %p57 = por %p55, %p56
      %p58 = scmp.ne.s32.totalorder %s50, %s53
      %p59 = scmp.eq.s32.totalorder %s19, 0
      %p60 = por %p58, %p59
      %p61 = scmp.ne.s32.totalorder %s50, %s53
      %p62 = scmp.eq.s32.totalorder %s24, 1
      %p63 = por %p61, %p62
      %p64 = scmp.ne.s32.totalorder %s53, %s54
      %p65 = scmp.eq.s32.totalorder %s24, 0
      %p66 = por %p64, %p65
      %p67 = scmp.ne.s32.totalorder %s53, %s54
      %p68 = scmp.eq.s32.totalorder %s25, 1
      %p69 = por %p67, %p68
      %p71 = scmp.ne.s32.totalorder %s54, %s70
      %p72 = scmp.eq.s32.totalorder %s25, 0
      %p73 = por %p71, %p72
      %s74 = sadd.s32 %s28, 1
      %s75 = smul.u32 %s74, 6
      %s76 = sadd.s32 %s37, 1
      %s77 = smul.u32 %s76, 6
      %s78 = ssub.s32 %s26, %s45
      %s79 = ssub.s32 %s75, %s77
      %s80 = sor.u32 %s78, %s79
      %p81 = scmp.eq.s32.totalorder %s80, 0
      %s83 = sadd.s32 %s82, 1
      %s84 = scalar_select %p81, %s82, %s83
      %p87 = pneg %p81
      %p88 = scmp.eq.s32.totalorder %s19, 1
      %p89 = por %p87, %p88
      %p90 = scmp.ne.s32.totalorder %s82, %s85
      %p91 = scmp.eq.s32.totalorder %s19, 0
      %p92 = por %p90, %p91
      %p93 = scmp.ne.s32.totalorder %s82, %s85
      %p94 = scmp.eq.s32.totalorder %s24, 1
      %p95 = por %p93, %p94
      %p96 = scmp.ne.s32.totalorder %s85, %s86
      %p97 = scmp.eq.s32.totalorder %s24, 0
      %p98 = por %p96, %p97
      %p99 = scmp.ne.s32.totalorder %s85, %s86
      %p100 = scmp.eq.s32.totalorder %s25, 1
      %p101 = por %p99, %p100
      %p103 = scmp.ne.s32.totalorder %s86, %s102
      %p104 = scmp.eq.s32.totalorder %s25, 0
      %p105 = por %p103, %p104
      %s106 = ssub.s32 %s27, %s41
      %p107 = scmp.eq.s32.totalorder %s106, 0
      %s109 = sadd.s32 %s108, 1
      %s110 = scalar_select %p107, %s108, %s109
      %p113 = pneg %p107
      %p114 = scmp.eq.s32.totalorder %s19, 1
      %p115 = por %p113, %p114
      %p116 = scmp.ne.s32.totalorder %s108, %s111
      %p117 = scmp.eq.s32.totalorder %s19, 0
      %p118 = por %p116, %p117
      %p119 = scmp.ne.s32.totalorder %s108, %s111
      %p120 = scmp.eq.s32.totalorder %s24, 1
      %p121 = por %p119, %p120
      %p122 = scmp.ne.s32.totalorder %s111, %s112
      %p123 = scmp.eq.s32.totalorder %s24, 0
      %p124 = por %p122, %p123
      %p125 = scmp.ne.s32.totalorder %s111, %s112
      %p126 = scmp.eq.s32.totalorder %s25, 1
      %p127 = por %p125, %p126
      %p129 = scmp.ne.s32.totalorder %s112, %s128
      %p130 = scmp.eq.s32.totalorder %s25, 0
      %p131 = por %p129, %p130
      %s132 = ssub.s32 %s27, %s41
      %p133 = scmp.eq.s32.totalorder %s132, 0
      %s135 = sadd.s32 %s134, 1
      %s136 = scalar_select %p133, %s134, %s135
      %p139 = pneg %p133
      %p140 = scmp.eq.s32.totalorder %s19, 1
      %p141 = por %p139, %p140
      %p142 = scmp.ne.s32.totalorder %s134, %s137
      %p143 = scmp.eq.s32.totalorder %s19, 0
      %p144 = por %p142, %p143
      %p145 = scmp.ne.s32.totalorder %s134, %s137
      %p146 = scmp.eq.s32.totalorder %s24, 1
      %p147 = por %p145, %p146
      %p148 = scmp.ne.s32.totalorder %s137, %s138
      %p149 = scmp.eq.s32.totalorder %s24, 0
      %p150 = por %p148, %p149
      %p151 = scmp.ne.s32.totalorder %s137, %s138
      %p152 = scmp.eq.s32.totalorder %s25, 1
      %p153 = por %p151, %p152
      %p155 = scmp.ne.s32.totalorder %s138, %s154
      %p156 = scmp.eq.s32.totalorder %s25, 0
      %p157 = por %p155, %p156
      %s158 = ssub.s32 %s26, %s45
      %s159 = ssub.s32 %s27, %s41
      %s160 = sor.u32 %s158, %s159
      %s161 = ssub.s32 %s28, %s37
      %s162 = sor.u32 %s160, %s161
      %p163 = scmp.eq.s32.totalorder %s162, 0
      %s165 = sadd.s32 %s164, 1
      %s166 = scalar_select %p163, %s164, %s165
      %p169 = pneg %p163
      %p170 = scmp.eq.s32.totalorder %s19, 1
      %p171 = por %p169, %p170
      %p172 = scmp.ne.s32.totalorder %s164, %s167
      %p173 = scmp.eq.s32.totalorder %s19, 0
      %p174 = por %p172, %p173
      %p175 = scmp.ne.s32.totalorder %s164, %s167
      %p176 = scmp.eq.s32.totalorder %s24, 1
      %p177 = por %p175, %p176
      %p178 = scmp.ne.s32.totalorder %s167, %s168
      %p179 = scmp.eq.s32.totalorder %s24, 0
      %p180 = por %p178, %p179
      %p181 = scmp.ne.s32.totalorder %s167, %s168
      %p182 = scmp.eq.s32.totalorder %s25, 1
      %p183 = por %p181, %p182
      %p185 = scmp.ne.s32.totalorder %s168, %s184
      %p186 = scmp.eq.s32.totalorder %s25, 0
      %p187 = por %p185, %p186
      %p188 = scmp.le.s32.totalorder 1, %s19
      %p189 = scmp.lt.s32.totalorder %s19, 3
      %p190 = pnand %p188, %p189
      %p191 = pneg %p190
      // Predicated region
      $region9: #{tpu_custom_call.1} parent=5 // pred_check
        _
      $region10: #{tpu_custom_call.1} parent=5 // pred_check_branch
        %193 = sbr.rel (%p190) target = $region12
      $region11: #{tpu_custom_call.1} parent=5 // pred_region
        %s194 = ssub.s32 %s19, 1
        // Predicated region
        $region13: #{tpu_custom_call.1} parent=11 // pred_check
          %p195 = pneg %p124
        $region14: #{tpu_custom_call.1} parent=11 // pred_check_branch
          %197 = sbr.rel (%p195) target = $region16
        $region15: #{tpu_custom_call.1} parent=11 // pred_region
          %s199 = ssub.s32 384, 384
          %200 = vsyncadd [#allocation6], %s199
          %s201 = smul.addr %s30, 128
          %s202 = scalar_lea.hbm %s2, %s201
          %s203 = sshll.u32 [#allocation7], 4
          %s204 = int_to_ptr.vmem [resolvable:$true] %s203
          %209 = dma.hbm_to_vmem [thread:$0]  %s202, 384, %s204, [#allocation6], 128, 128, 8
        $region16: #{tpu_custom_call.1} parent=11 // pred_fallthru
          _
        // Predicated region
        $region17: #{tpu_custom_call.1} parent=11 // pred_check
          %p210 = pneg %p150
        $region18: #{tpu_custom_call.1} parent=11 // pred_check_branch
          %212 = sbr.rel (%p210) target = $region20
        $region19: #{tpu_custom_call.1} parent=11 // pred_region
          %p213 = scmp.lt.s32.totalorder %s30, 0
          %s214 = scalar_select %p213, %s30, 0
          %s215 = smul.addr %s214, 8
          %s216 = scalar_lea.vmem %s3, %s215
        $region20: #{tpu_custom_call.1} parent=11 // pred_fallthru
          _
      $region12: #{tpu_custom_call.1} parent=5 // pred_fallthru
        _
      %p217 = scmp.lt.s32.totalorder %s19, 2
      // Predicated region
      $region21: #{tpu_custom_call.1} parent=5 // pred_check
        %p218 = pneg %p217
      $region22: #{tpu_custom_call.1} parent=5 // pred_check_branch
        %220 = sbr.rel (%p218) target = $region24
      $region23: #{tpu_custom_call.1} parent=5 // pred_region
        // Predicated region
        $region25: #{tpu_custom_call.1} parent=23 // pred_check
          %p221 = pneg %p60
        $region26: #{tpu_custom_call.1} parent=23 // pred_check_branch
          %223 = sbr.rel (%p221) target = $region28
        $region27: #{tpu_custom_call.1} parent=23 // pred_region
          %s224 = sand.u32 %s50, 1
          %s225 = scalar_lea.sflag [#allocation3], %s224
          %s226 = sand.u32 %s50, 1
          %s227 = smul.addr %s226, 72
          %s228 = scalar_lea.vmem [#allocation2], %s227
          %s229 = smul.u32 18, %s28
          %s230 = ssub.s32 21, %s229
          %p231 = scmp.lt.s32.totalorder %s230, 18
          %s232 = scalar_select %p231, %s230, 18
          %s233 = smul.u32 64, %s232
          %s235 = ssub.s32 1152, %s233
          %236 = vsyncadd %s225, %s235
          %p237 = scmp.ne.s32.totalorder 0, %s233
          %s238 = smul.addr %s26, 21
          %s239 = sadd.s32 %s229, %s238
          %s240 = smul.addr %s239, 64
          %s241 = scalar_lea.hbm %s0, %s240
          %s242 = smul.u32 %s232, 4
          %s243 = sshll.u32 %s242, 4
          %s244 = sshll.u32 %s228, 4
          %s245 = int_to_ptr.vmem [resolvable:$true] %s244
          %247 = dma.hbm_to_vmem [thread:$0]  (%p237), %s241, %s243, %s245, %s225
        $region28: #{tpu_custom_call.1} parent=23 // pred_fallthru
          _
        // Predicated region
        $region29: #{tpu_custom_call.1} parent=23 // pred_check
          %p248 = pneg %p92
        $region30: #{tpu_custom_call.1} parent=23 // pred_check_branch
          %250 = sbr.rel (%p248) target = $region32
        $region31: #{tpu_custom_call.1} parent=23 // pred_region
          %s251 = sand.u32 %s19, 1
          %s252 = scalar_lea.sflag [#allocation6], %s251
          %s253 = sand.u32 %s82, 1
          %s254 = smul.addr %s253, 12
          %s255 = scalar_lea.vmem [#allocation5], %s254
          %s256 = sadd.s32 %s28, 1
          %s257 = smul.u32 %s256, 6
          %s258 = smul.u32 3, %s257
          %s260 = ssub.s32 192, 192
          %261 = vsyncadd %s252, %s260
          %s262 = smul.addr %s26, 21
          %s263 = sadd.s32 %s258, %s262
          %s264 = smul.addr %s263, 64
          %s265 = scalar_lea.hbm %s1, %s264
          %s267 = sshll.u32 %s255, 4
          %s268 = int_to_ptr.vmem [resolvable:$true] %s267
          %270 = dma.hbm_to_vmem [thread:$0]  %s265, 192, %s268, %s252
        $region32: #{tpu_custom_call.1} parent=23 // pred_fallthru
          _
      $region24: #{tpu_custom_call.1} parent=5 // pred_fallthru
        _
      %p271 = scmp.le.s32.totalorder 1, %s19
      %p272 = scmp.lt.s32.totalorder %s19, 3
      %p273 = pnand %p271, %p272
      %p274 = pneg %p273
      // Predicated region
      $region33: #{tpu_custom_call.1} parent=5 // pred_check
        _
      $region34: #{tpu_custom_call.1} parent=5 // pred_check_branch
        %276 = sbr.rel (%p273) target = $region36
      $region35: #{tpu_custom_call.1} parent=5 // pred_region
        %s277 = ssub.s32 %s19, 1
        %s278 = sand.u32 %s53, 1
        %s279 = scalar_lea.sflag [#allocation3], %s278
        %s280 = sand.u32 %s53, 1
        %s281 = smul.addr %s280, 72
        %s282 = scalar_lea.vmem [#allocation2], %s281
        // Predicated region
        $region37: #{tpu_custom_call.1} parent=35 // pred_check
          %p283 = pneg %p66
        $region38: #{tpu_custom_call.1} parent=35 // pred_check_branch
          %285 = sbr.rel (%p283) target = $region40
        $region39: #{tpu_custom_call.1} parent=35 // pred_region
          %286 = dma.done %s279, 1152
        $region40: #{tpu_custom_call.1} parent=35 // pred_fallthru
          _
        %s287 = sand.u32 %s24, 1
        %s288 = scalar_lea.sflag [#allocation6], %s287
        %s289 = sand.u32 %s85, 1
        %s290 = smul.addr %s289, 12
        %s291 = scalar_lea.vmem [#allocation5], %s290
        // Predicated region
        $region41: #{tpu_custom_call.1} parent=35 // pred_check
          %p292 = pneg %p98
        $region42: #{tpu_custom_call.1} parent=35 // pred_check_branch
          %294 = sbr.rel (%p292) target = $region44
        $region43: #{tpu_custom_call.1} parent=35 // pred_region
          %295 = dma.done %s288, 192
        $region44: #{tpu_custom_call.1} parent=35 // pred_fallthru
          _
        // Predicated region
        $region45: #{tpu_custom_call.1} parent=35 // pred_check
          %p296 = pneg %p124
        $region46: #{tpu_custom_call.1} parent=35 // pred_check_branch
          %298 = sbr.rel (%p296) target = $region48
        $region47: #{tpu_custom_call.1} parent=35 // pred_region
          %299 = dma.done [#allocation6], 384
        $region48: #{tpu_custom_call.1} parent=35 // pred_fallthru
          _
        %s300 = sand.u32 %s53, 1
        %s301 = scalar_lea.sflag [#allocation3], %s300
        %s302 = sand.u32 %s53, 1
        %s303 = smul.addr %s302, 72
        %s304 = scalar_lea.vmem [#allocation2], %s303
        %p305 = pneg %p66
        %p306 = pneg %p63
        %s307 = sand.u32 %s24, 1
        %s308 = scalar_lea.sflag [#allocation6], %s307
        %s309 = sand.u32 %s85, 1
        %s310 = smul.addr %s309, 12
        %s311 = scalar_lea.vmem [#allocation5], %s310
        %p312 = pneg %p98
        %p313 = pneg %p95
        %p314 = pneg %p124
        %p315 = pneg %p121
        %p316 = scmp.lt.s32.totalorder %s30, 0
        %s317 = scalar_select %p316, %s30, 0
        %s318 = smul.addr %s317, 8
        %s319 = scalar_lea.vmem %s3, %s318
        %p320 = pneg %p150
        %p321 = pneg %p147
        %p322 = pneg %p180
        %p323 = pneg %p177
        %s324 = sand.u32 %s167, 1
        %s325 = scalar_lea.sflag [#allocation4], %s324
        %s326 = sand.u32 %s167, 1
        %s327 = smul.addr %s326, 144
        %s328 = scalar_lea.vmem [#allocation8], %s327
        %s329 = smul.u32 18, %s31
        %s330 = ssub.s32 21, %s329
        %p331 = scmp.lt.s32.totalorder %s330, 18
        %s332 = scalar_select %p331, %s330, 18
        %s333 = smul.u32 64, %s332
        %s334 = sadd.s32 %s31, 1
        %s335 = smul.u32 %s334, 6
        %s336 = smul.u32 3, %s335
        %p337 = scmp.lt.s32.totalorder %s30, 0
        %s338 = scalar_select %p337, %s30, 0
        %s339 = smul.addr %s338, 8
        %s340 = scalar_lea.vmem %s3, %s339
        %s341 = smul.u32 18, %s31
        %v342 = vld [vmem:[%s282] sm:$0xff]
        %v343 = vld [vmem:[%s282 + $0x8] sm:$0xff]
        %v344 = vld [vmem:[%s282 + $0x10] sm:$0xff]
        %v345 = vld [vmem:[%s282 + $0x18] sm:$0xff]
        %v346 = vld [vmem:[%s282 + $0x20] sm:$0xff]
        %v347 = vld [vmem:[%s282 + $0x28] sm:$0xff]
        %v348 = vld [vmem:[%s282 + $0x30] sm:$0xff]
        %v349 = vld [vmem:[%s282 + $0x38] sm:$0xff]
        %v350 = vld [vmem:[%s282 + $0x40] sm:$0xff]
        %v351 = vld [vmem:[%s291] sm:$0xff]
        %v352 = vld [vmem:[%s291 + $0x8] sm:$0xf]
        %v362 = vcombine.high %v342, %v342
        %v363 = vcombine.high %v343, %v343
        %v364 = vcombine.high %v344, %v344
        %v365 = vcombine.high %v345, %v345
        %v366 = vcombine.high %v346, %v346
        %v367 = vcombine.high %v347, %v347
        %v368 = vcombine.high %v348, %v348
        %v369 = vcombine.high %v349, %v349
        %v370 = vcombine.high %v350, %v350
        %v382 = vcombine.high %v351, %v351
        %v384 = vrot.slane %v342, 4
        %v385 = vrot.slane %v362, 4
        %v386 = vrot.slane %v343, 4
        %v387 = vrot.slane %v363, 4
        %v388 = vrot.slane %v344, 4
        %v389 = vrot.slane %v364, 4
        %v390 = vrot.slane %v345, 4
        %v391 = vrot.slane %v365, 4
        %v392 = vrot.slane %v346, 4
        %v393 = vrot.slane %v366, 4
        %v394 = vrot.slane %v347, 4
        %v395 = vrot.slane %v367, 4
        %v396 = vrot.slane %v348, 4
        %v397 = vrot.slane %v368, 4
        %v398 = vrot.slane %v349, 4
        %v399 = vrot.slane %v369, 4
        %v400 = vrot.slane %v350, 4
        %v401 = vrot.slane %v370, 4
        %v402 = vrot.slane %v351, 4
        %v403 = vrot.slane %v382, 4
        %v404 = vrot.slane %v352, 4
        %405 = vrot.lane.b32.xlu0 %v384, 127
        %v406 = vpop.permute.xlu0 %405
        %407 = vrot.lane.b32.xlu0 %v385, 127
        %v408 = vpop.permute.xlu0 %407
        %409 = vrot.lane.b32.xlu0 %v386, 127
        %v410 = vpop.permute.xlu0 %409
        %411 = vrot.lane.b32.xlu0 %v387, 127
        %v412 = vpop.permute.xlu0 %411
        %413 = vrot.lane.b32.xlu0 %v388, 127
        %v414 = vpop.permute.xlu0 %413
        %415 = vrot.lane.b32.xlu0 %v389, 127
        %v416 = vpop.permute.xlu0 %415
        %417 = vrot.lane.b32.xlu0 %v390, 127
        %v418 = vpop.permute.xlu0 %417
        %419 = vrot.lane.b32.xlu0 %v391, 127
        %v420 = vpop.permute.xlu0 %419
        %421 = vrot.lane.b32.xlu0 %v392, 127
        %v422 = vpop.permute.xlu0 %421
        %423 = vrot.lane.b32.xlu0 %v393, 127
        %v424 = vpop.permute.xlu0 %423
        %425 = vrot.lane.b32.xlu0 %v394, 127
        %v426 = vpop.permute.xlu0 %425
        %427 = vrot.lane.b32.xlu0 %v395, 127
        %v428 = vpop.permute.xlu0 %427
        %429 = vrot.lane.b32.xlu0 %v396, 127
        %v430 = vpop.permute.xlu0 %429
        %431 = vrot.lane.b32.xlu0 %v397, 127
        %v432 = vpop.permute.xlu0 %431
        %433 = vrot.lane.b32.xlu0 %v398, 127
        %v434 = vpop.permute.xlu0 %433
        %435 = vrot.lane.b32.xlu0 %v399, 127
        %v436 = vpop.permute.xlu0 %435
        %437 = vrot.lane.b32.xlu0 %v400, 127
        %v438 = vpop.permute.xlu0 %437
        %439 = vrot.lane.b32.xlu0 %v401, 127
        %v440 = vpop.permute.xlu0 %439
        %441 = vrot.lane.b32.xlu0 %v402, 127
        %v442 = vpop.permute.xlu0 %441
        %443 = vrot.lane.b32.xlu0 %v403, 127
        %v444 = vpop.permute.xlu0 %443
        %445 = vrot.lane.b32.xlu0 %v404, 127
        %v446 = vpop.permute.xlu0 %445
        %vm447 = vcmask 1039360
        %v448 = vsel %vm447, %v406, %v408
        %v449 = vsel %vm447, %v408, %v410
        %v450 = vsel %vm447, %v410, %v412
        %v451 = vsel %vm447, %v412, %v414
        %v452 = vsel %vm447, %v414, %v416
        %v453 = vsel %vm447, %v416, %v418
        %v454 = vsel %vm447, %v418, %v420
        %v455 = vsel %vm447, %v420, %v422
        %v456 = vsel %vm447, %v422, %v424
        %v457 = vsel %vm447, %v424, %v426
        %v458 = vsel %vm447, %v426, %v428
        %v459 = vsel %vm447, %v428, %v430
        %v460 = vsel %vm447, %v430, %v432
        %v461 = vsel %vm447, %v432, %v434
        %v462 = vsel %vm447, %v434, %v436
        %v463 = vsel %vm447, %v436, %v438
        %v464 = vsel %vm447, %v438, %v440
        %v465 = vsel %vm447, %v440, %v442
        %v466 = vsel %vm447, %v442, %v444
        %v467 = vsel %vm447, %v444, %v446
        %488 = vrot.lane.b32.xlu0 %v342, 126
        %v489 = vpop.permute.xlu0 %488
        %490 = vrot.lane.b32.xlu0 %v362, 126
        %v491 = vpop.permute.xlu0 %490
        %492 = vrot.lane.b32.xlu0 %v343, 126
        %v493 = vpop.permute.xlu0 %492
        %494 = vrot.lane.b32.xlu0 %v363, 126
        %v495 = vpop.permute.xlu0 %494
        %496 = vrot.lane.b32.xlu0 %v344, 126
        %v497 = vpop.permute.xlu0 %496
        %498 = vrot.lane.b32.xlu0 %v364, 126
        %v499 = vpop.permute.xlu0 %498
        %500 = vrot.lane.b32.xlu0 %v345, 126
        %v501 = vpop.permute.xlu0 %500
        %502 = vrot.lane.b32.xlu0 %v365, 126
        %v503 = vpop.permute.xlu0 %502
        %504 = vrot.lane.b32.xlu0 %v346, 126
        %v505 = vpop.permute.xlu0 %504
        %506 = vrot.lane.b32.xlu0 %v366, 126
        %v507 = vpop.permute.xlu0 %506
        %508 = vrot.lane.b32.xlu0 %v347, 126
        %v509 = vpop.permute.xlu0 %508
        %510 = vrot.lane.b32.xlu0 %v367, 126
        %v511 = vpop.permute.xlu0 %510
        %512 = vrot.lane.b32.xlu0 %v348, 126
        %v513 = vpop.permute.xlu0 %512
        %514 = vrot.lane.b32.xlu0 %v368, 126
        %v515 = vpop.permute.xlu0 %514
        %516 = vrot.lane.b32.xlu0 %v349, 126
        %v517 = vpop.permute.xlu0 %516
        %518 = vrot.lane.b32.xlu0 %v369, 126
        %v519 = vpop.permute.xlu0 %518
        %520 = vrot.lane.b32.xlu0 %v350, 126
        %v521 = vpop.permute.xlu0 %520
        %522 = vrot.lane.b32.xlu0 %v370, 126
        %v523 = vpop.permute.xlu0 %522
        %524 = vrot.lane.b32.xlu0 %v351, 126
        %v525 = vpop.permute.xlu0 %524
        %526 = vrot.lane.b32.xlu0 %v382, 126
        %v527 = vpop.permute.xlu0 %526
        %528 = vrot.lane.b32.xlu0 %v352, 126
        %v529 = vpop.permute.xlu0 %528
        %vm530 = vcmask 1031168
        %v531 = vsel %vm530, %v489, %v491
        %v532 = vsel %vm530, %v491, %v493
        %v533 = vsel %vm530, %v493, %v495
        %v534 = vsel %vm530, %v495, %v497
        %v535 = vsel %vm530, %v497, %v499
        %v536 = vsel %vm530, %v499, %v501
        %v537 = vsel %vm530, %v501, %v503
        %v538 = vsel %vm530, %v503, %v505
        %v539 = vsel %vm530, %v505, %v507
        %v540 = vsel %vm530, %v507, %v509
        %v541 = vsel %vm530, %v509, %v511
        %v542 = vsel %vm530, %v511, %v513
        %v543 = vsel %vm530, %v513, %v515
        %v544 = vsel %vm530, %v515, %v517
        %v545 = vsel %vm530, %v517, %v519
        %v546 = vsel %vm530, %v519, %v521
        %v547 = vsel %vm530, %v521, %v523
        %v548 = vsel %vm530, %v523, %v525
        %v549 = vsel %vm530, %v525, %v527
        %v550 = vsel %vm530, %v527, %v529
        %vm551 = vcmask 1043456
        %v552 = vsel %vm551, %v342, %v448
        %v553 = vsel %vm551, %v362, %v449
        %v554 = vsel %vm551, %v343, %v450
        %v555 = vsel %vm551, %v363, %v451
        %v556 = vsel %vm551, %v344, %v452
        %v557 = vsel %vm551, %v364, %v453
        %v558 = vsel %vm551, %v345, %v454
        %v559 = vsel %vm551, %v365, %v455
        %v560 = vsel %vm551, %v346, %v456
        %v561 = vsel %vm551, %v366, %v457
        %v562 = vsel %vm551, %v347, %v458
        %v563 = vsel %vm551, %v367, %v459
        %v564 = vsel %vm551, %v348, %v460
        %v565 = vsel %vm551, %v368, %v461
        %v566 = vsel %vm551, %v349, %v462
        %v567 = vsel %vm551, %v369, %v463
        %v568 = vsel %vm551, %v350, %v464
        %v569 = vsel %vm551, %v370, %v465
        %v570 = vsel %vm551, %v351, %v466
        %v571 = vsel %vm551, %v382, %v467
        %v572 = vld [vmem:[#allocation7] sm:$0xff]
        %s573 = scalar_lea.vmem [#allocation7], 8
        %v574 = vld [vmem:[%s573] sm:$0xff]
        %vm575 = vcmask 97280
        %v577 = vsel %vm575, %v574, 0
        %v579 = vsel %vm551, %v532, 0
        %v581 = vsel %vm551, %v533, 0
        %v583 = vsel %vm551, %v534, 0
        %v585 = vsel %vm551, %v535, 0
        %v587 = vsel %vm551, %v536, 0
        %v589 = vsel %vm551, %v537, 0
        %v591 = vsel %vm551, %v538, 0
        %v593 = vsel %vm551, %v539, 0
        %v595 = vsel %vm551, %v540, 0
        %v597 = vsel %vm551, %v541, 0
        %v599 = vsel %vm551, %v542, 0
        %v601 = vsel %vm551, %v543, 0
        %v603 = vsel %vm551, %v544, 0
        %v605 = vsel %vm551, %v545, 0
        %v607 = vsel %vm551, %v546, 0
        %v609 = vsel %vm551, %v547, 0
        %v611 = vsel %vm551, %v548, 0
        %v613 = vsel %vm551, %v549, 0
        %615 = vmatprep.subr.mxu0 %v554
        %616 = vmatpush1.msra.mxu0 %v553
        %617 = vmatprep.subr.mxu0 %v581
        %618 = vmatpush1.msra.mxu0 %v579
        %619 = vmatprep.subr.mxu0 0.0
        %620 = vmatpush1.msra.mxu0 0.0
        %621 = vmatprep.subr.mxu0 0.0
        %622 = vmatpush1.msra.mxu0 0.0
        %623 = vmatprep.subr.mxu0 0.0
        %624 = vmatpush1.msra.mxu0 0.0
        %625 = vmatprep.subr.mxu0 0.0
        %626 = vmatpush1.msra.mxu0 0.0
        %627 = vmatprep.subr.mxu0 0.0
        %628 = vmatpush1.msra.mxu0 0.0
        %629 = vmatprep.subr.mxu0 0.0
        %630 = vmatpush1.msra.mxu0 0.0
        %631 = vmatprep.subr.mxu0 0.0
        %632 = vmatpush1.msra.mxu0 0.0
        %633 = vmatprep.subr.mxu0 0.0
        %634 = vmatpush1.msra.mxu0 0.0
        %635 = vmatprep.subr.mxu0 0.0
        %636 = vmatpush1.msra.mxu0 0.0
        %637 = vmatprep.subr.mxu0 0.0
        %638 = vmatpush1.msra.mxu0 0.0
        %639 = vmatprep.subr.mxu0 0.0
        %640 = vmatpush1.msra.mxu0 0.0
        %641 = vmatprep.subr.mxu0 0.0
        %642 = vmatpush1.msra.mxu0 0.0
        %643 = vmatprep.subr.mxu0 0.0
        %644 = vmatpush1.msra.mxu0 0.0
        %645 = vmatprep.subr.mxu0 0.0
        %646 = vmatpush1.msra.mxu0 0.0
        %647 = vmatprep.subr.mxu0 0.0
        %648 = vmatpush1.msra.mxu0 0.0
        %649 = vmatprep.subr.mxu0 0.0
        %650 = vmatpush1.msra.mxu0 0.0
        %651 = vmatprep.subr.mxu0 0.0
        %652 = vmatpush1.msra.mxu0 0.0
        %653 = vmatprep.subr.mxu0 0.0
        %654 = vmatpush1.msra.mxu0 0.0
        %655 = vmatprep.subr.mxu0 0.0
        %656 = vmatpush1.msra.mxu0 0.0
        %657 = vmatprep.subr.mxu0 0.0
        %658 = vmatpush1.msra.mxu0 0.0
        %659 = vmatprep.subr.mxu0 0.0
        %660 = vmatpush1.msra.mxu0 0.0
        %661 = vmatprep.subr.mxu0 0.0
        %662 = vmatpush1.msra.mxu0 0.0
        %663 = vmatprep.subr.mxu0 0.0
        %664 = vmatpush1.msra.mxu0 0.0
        %665 = vmatprep.subr.mxu0 0.0
        %666 = vmatpush1.msra.mxu0 0.0
        %667 = vmatprep.subr.mxu0 0.0
        %668 = vmatpush1.msra.mxu0 0.0
        %669 = vmatprep.subr.mxu0 0.0
        %670 = vmatpush1.msra.mxu0 0.0
        %671 = vmatprep.subr.mxu0 0.0
        %672 = vmatpush1.msra.mxu0 0.0
        %673 = vmatprep.subr.mxu0 0.0
        %674 = vmatpush1.msra.mxu0 0.0
        %675 = vmatprep.subr.mxu0 0.0
        %676 = vmatpush1.msra.mxu0 0.0
        %677 = vmatprep.subr.mxu0 0.0
        %678 = vmatpush1.msra.mxu0 0.0
        %679 = vmatprep.mubr.f32.mxu0 0.0
        %680 = vmatmul.mubr.f32.gmra.mrb[0].mxu0 %v577
        %v681 = vpop.f32.mrb[0].mxu0
        %v682 = vadd.f32 0.0, %v681
        %v683 = vpop.f32.mrb[0].mxu0
        %v684 = vadd.f32 0.0, %v683
        %685 = vdwg.mxu0
        %686 = vmatprep.subr.mxu0 %v556
        %687 = vmatpush1.msra.mxu0 %v555
        %688 = vmatprep.subr.mxu0 %v585
        %689 = vmatpush1.msra.mxu0 %v583
        %690 = vmatprep.subr.mxu0 0.0
        %691 = vmatpush1.msra.mxu0 0.0
        %692 = vmatprep.subr.mxu0 0.0
        %693 = vmatpush1.msra.mxu0 0.0
        %694 = vmatprep.subr.mxu0 0.0
        %695 = vmatpush1.msra.mxu0 0.0
        %696 = vmatprep.subr.mxu0 0.0
        %697 = vmatpush1.msra.mxu0 0.0
        %698 = vmatprep.subr.mxu0 0.0
        %699 = vmatpush1.msra.mxu0 0.0
        %700 = vmatprep.subr.mxu0 0.0
        %701 = vmatpush1.msra.mxu0 0.0
        %702 = vmatprep.subr.mxu0 0.0
        %703 = vmatpush1.msra.mxu0 0.0
        %704 = vmatprep.subr.mxu0 0.0
        %705 = vmatpush1.msra.mxu0 0.0
        %706 = vmatprep.subr.mxu0 0.0
        %707 = vmatpush1.msra.mxu0 0.0
        %708 = vmatprep.subr.mxu0 0.0
        %709 = vmatpush1.msra.mxu0 0.0
        %710 = vmatprep.subr.mxu0 0.0
        %711 = vmatpush1.msra.mxu0 0.0
        %712 = vmatprep.subr.mxu0 0.0
        %713 = vmatpush1.msra.mxu0 0.0
        %714 = vmatprep.subr.mxu0 0.0
        %715 = vmatpush1.msra.mxu0 0.0
        %716 = vmatprep.subr.mxu0 0.0
        %717 = vmatpush1.msra.mxu0 0.0
        %718 = vmatprep.subr.mxu0 0.0
        %719 = vmatpush1.msra.mxu0 0.0
        %720 = vmatprep.subr.mxu0 0.0
        %721 = vmatpush1.msra.mxu0 0.0
        %722 = vmatprep.subr.mxu0 0.0
        %723 = vmatpush1.msra.mxu0 0.0
        %724 = vmatprep.subr.mxu0 0.0
        %725 = vmatpush1.msra.mxu0 0.0
        %726 = vmatprep.subr.mxu0 0.0
        %727 = vmatpush1.msra.mxu0 0.0
        %728 = vmatprep.subr.mxu0 0.0
        %729 = vmatpush1.msra.mxu0 0.0
        %730 = vmatprep.subr.mxu0 0.0
        %731 = vmatpush1.msra.mxu0 0.0
        %732 = vmatprep.subr.mxu0 0.0
        %733 = vmatpush1.msra.mxu0 0.0
        %734 = vmatprep.subr.mxu0 0.0
        %735 = vmatpush1.msra.mxu0 0.0
        %736 = vmatprep.subr.mxu0 0.0
        %737 = vmatpush1.msra.mxu0 0.0
        %738 = vmatprep.subr.mxu0 0.0
        %739 = vmatpush1.msra.mxu0 0.0
        %740 = vmatprep.subr.mxu0 0.0
        %741 = vmatpush1.msra.mxu0 0.0
        %742 = vmatprep.subr.mxu0 0.0
        %743 = vmatpush1.msra.mxu0 0.0
        %744 = vmatprep.subr.mxu0 0.0
        %745 = vmatpush1.msra.mxu0 0.0
        %746 = vmatprep.subr.mxu0 0.0
        %747 = vmatpush1.msra.mxu0 0.0
        %748 = vmatprep.subr.mxu0 0.0
        %749 = vmatpush1.msra.mxu0 0.0
        %750 = vmatprep.mubr.f32.mxu0 0.0
        %751 = vmatmul.mubr.f32.gmra.mrb[0].mxu0 %v577
        %v752 = vpop.f32.mrb[0].mxu0
        %v753 = vadd.f32 0.0, %v752
        %v754 = vpop.f32.mrb[0].mxu0
        %v755 = vadd.f32 0.0, %v754
        %756 = vdwg.mxu0
        %757 = vmatprep.subr.mxu0 %v558
        %758 = vmatpush1.msra.mxu0 %v557
        %759 = vmatprep.subr.mxu0 %v589
        %760 = vmatpush1.msra.mxu0 %v587
        %761 = vmatprep.subr.mxu0 0.0
        %762 = vmatpush1.msra.mxu0 0.0
        %763 = vmatprep.subr.mxu0 0.0
        %764 = vmatpush1.msra.mxu0 0.0
        %765 = vmatprep.subr.mxu0 0.0
        %766 = vmatpush1.msra.mxu0 0.0
        %767 = vmatprep.subr.mxu0 0.0
        %768 = vmatpush1.msra.mxu0 0.0
        %769 = vmatprep.subr.mxu0 0.0
        %770 = vmatpush1.msra.mxu0 0.0
        %771 = vmatprep.subr.mxu0 0.0
        %772 = vmatpush1.msra.mxu0 0.0
        %773 = vmatprep.subr.mxu0 0.0
        %774 = vmatpush1.msra.mxu0 0.0
        %775 = vmatprep.subr.mxu0 0.0
        %776 = vmatpush1.msra.mxu0 0.0
        %777 = vmatprep.subr.mxu0 0.0
        %778 = vmatpush1.msra.mxu0 0.0
        %779 = vmatprep.subr.mxu0 0.0
        %780 = vmatpush1.msra.mxu0 0.0
        %781 = vmatprep.subr.mxu0 0.0
        %782 = vmatpush1.msra.mxu0 0.0
        %783 = vmatprep.subr.mxu0 0.0
        %784 = vmatpush1.msra.mxu0 0.0
        %785 = vmatprep.subr.mxu0 0.0
        %786 = vmatpush1.msra.mxu0 0.0
        %787 = vmatprep.subr.mxu0 0.0
        %788 = vmatpush1.msra.mxu0 0.0
        %789 = vmatprep.subr.mxu0 0.0
        %790 = vmatpush1.msra.mxu0 0.0
        %791 = vmatprep.subr.mxu0 0.0
        %792 = vmatpush1.msra.mxu0 0.0
        %793 = vmatprep.subr.mxu0 0.0
        %794 = vmatpush1.msra.mxu0 0.0
        %795 = vmatprep.subr.mxu0 0.0
        %796 = vmatpush1.msra.mxu0 0.0
        %797 = vmatprep.subr.mxu0 0.0
        %798 = vmatpush1.msra.mxu0 0.0
        %799 = vmatprep.subr.mxu0 0.0
        %800 = vmatpush1.msra.mxu0 0.0
        %801 = vmatprep.subr.mxu0 0.0
        %802 = vmatpush1.msra.mxu0 0.0
        %803 = vmatprep.subr.mxu0 0.0
        %804 = vmatpush1.msra.mxu0 0.0
        %805 = vmatprep.subr.mxu0 0.0
        %806 = vmatpush1.msra.mxu0 0.0
        %807 = vmatprep.subr.mxu0 0.0
        %808 = vmatpush1.msra.mxu0 0.0
        %809 = vmatprep.subr.mxu0 0.0
        %810 = vmatpush1.msra.mxu0 0.0
        %811 = vmatprep.subr.mxu0 0.0
        %812 = vmatpush1.msra.mxu0 0.0
        %813 = vmatprep.subr.mxu0 0.0
        %814 = vmatpush1.msra.mxu0 0.0
        %815 = vmatprep.subr.mxu0 0.0
        %816 = vmatpush1.msra.mxu0 0.0
        %817 = vmatprep.subr.mxu0 0.0
        %818 = vmatpush1.msra.mxu0 0.0
        %819 = vmatprep.subr.mxu0 0.0
        %820 = vmatpush1.msra.mxu0 0.0
        %821 = vmatprep.mubr.f32.mxu0 0.0
        %822 = vmatmul.mubr.f32.gmra.mrb[0].mxu0 %v577
        %v823 = vpop.f32.mrb[0].mxu0
        %v824 = vadd.f32 0.0, %v823
        %v825 = vpop.f32.mrb[0].mxu0
        %v826 = vadd.f32 0.0, %v825
        %827 = vdwg.mxu0
        %828 = vmatprep.subr.mxu0 %v560
        %829 = vmatpush1.msra.mxu0 %v559
        %830 = vmatprep.subr.mxu0 %v593
        %831 = vmatpush1.msra.mxu0 %v591
        %832 = vmatprep.subr.mxu0 0.0
        %833 = vmatpush1.msra.mxu0 0.0
        %834 = vmatprep.subr.mxu0 0.0
        %835 = vmatpush1.msra.mxu0 0.0
        %836 = vmatprep.subr.mxu0 0.0
        %837 = vmatpush1.msra.mxu0 0.0
        %838 = vmatprep.subr.mxu0 0.0
        %839 = vmatpush1.msra.mxu0 0.0
        %840 = vmatprep.subr.mxu0 0.0
        %841 = vmatpush1.msra.mxu0 0.0
        %842 = vmatprep.subr.mxu0 0.0
        %843 = vmatpush1.msra.mxu0 0.0
        %844 = vmatprep.subr.mxu0 0.0
        %845 = vmatpush1.msra.mxu0 0.0
        %846 = vmatprep.subr.mxu0 0.0
        %847 = vmatpush1.msra.mxu0 0.0
        %848 = vmatprep.subr.mxu0 0.0
        %849 = vmatpush1.msra.mxu0 0.0
        %850 = vmatprep.subr.mxu0 0.0
        %851 = vmatpush1.msra.mxu0 0.0
        %852 = vmatprep.subr.mxu0 0.0
        %853 = vmatpush1.msra.mxu0 0.0
        %854 = vmatprep.subr.mxu0 0.0
        %855 = vmatpush1.msra.mxu0 0.0
        %856 = vmatprep.subr.mxu0 0.0
        %857 = vmatpush1.msra.mxu0 0.0
        %858 = vmatprep.subr.mxu0 0.0
        %859 = vmatpush1.msra.mxu0 0.0
        %860 = vmatprep.subr.mxu0 0.0
        %861 = vmatpush1.msra.mxu0 0.0
        %862 = vmatprep.subr.mxu0 0.0
        %863 = vmatpush1.msra.mxu0 0.0
        %864 = vmatprep.subr.mxu0 0.0
        %865 = vmatpush1.msra.mxu0 0.0
        %866 = vmatprep.subr.mxu0 0.0
        %867 = vmatpush1.msra.mxu0 0.0
        %868 = vmatprep.subr.mxu0 0.0
        %869 = vmatpush1.msra.mxu0 0.0
        %870 = vmatprep.subr.mxu0 0.0
        %871 = vmatpush1.msra.mxu0 0.0
        %872 = vmatprep.subr.mxu0 0.0
        %873 = vmatpush1.msra.mxu0 0.0
        %874 = vmatprep.subr.mxu0 0.0
        %875 = vmatpush1.msra.mxu0 0.0
        %876 = vmatprep.subr.mxu0 0.0
        %877 = vmatpush1.msra.mxu0 0.0
        %878 = vmatprep.subr.mxu0 0.0
        %879 = vmatpush1.msra.mxu0 0.0
        %880 = vmatprep.subr.mxu0 0.0
        %881 = vmatpush1.msra.mxu0 0.0
        %882 = vmatprep.subr.mxu0 0.0
        %883 = vmatpush1.msra.mxu0 0.0
        %884 = vmatprep.subr.mxu0 0.0
        %885 = vmatpush1.msra.mxu0 0.0
        %886 = vmatprep.subr.mxu0 0.0
        %887 = vmatpush1.msra.mxu0 0.0
        %888 = vmatprep.subr.mxu0 0.0
        %889 = vmatpush1.msra.mxu0 0.0
        %890 = vmatprep.subr.mxu0 0.0
        %891 = vmatpush1.msra.mxu0 0.0
        %892 = vmatprep.mubr.f32.mxu0 0.0
        %893 = vmatmul.mubr.f32.gmra.mrb[0].mxu0 %v577
        %v894 = vpop.f32.mrb[0].mxu0
        %v895 = vadd.f32 0.0, %v894
        %v896 = vpop.f32.mrb[0].mxu0
        %v897 = vadd.f32 0.0, %v896
        %898 = vdwg.mxu0
        %899 = vmatprep.subr.mxu0 %v562
        %900 = vmatpush1.msra.mxu0 %v561
        %901 = vmatprep.subr.mxu0 %v597
        %902 = vmatpush1.msra.mxu0 %v595
        %903 = vmatprep.subr.mxu0 0.0
        %904 = vmatpush1.msra.mxu0 0.0
        %905 = vmatprep.subr.mxu0 0.0
        %906 = vmatpush1.msra.mxu0 0.0
        %907 = vmatprep.subr.mxu0 0.0
        %908 = vmatpush1.msra.mxu0 0.0
        %909 = vmatprep.subr.mxu0 0.0
        %910 = vmatpush1.msra.mxu0 0.0
        %911 = vmatprep.subr.mxu0 0.0
        %912 = vmatpush1.msra.mxu0 0.0
        %913 = vmatprep.subr.mxu0 0.0
        %914 = vmatpush1.msra.mxu0 0.0
        %915 = vmatprep.subr.mxu0 0.0
        %916 = vmatpush1.msra.mxu0 0.0
        %917 = vmatprep.subr.mxu0 0.0
        %918 = vmatpush1.msra.mxu0 0.0
        %919 = vmatprep.subr.mxu0 0.0
        %920 = vmatpush1.msra.mxu0 0.0
        %921 = vmatprep.subr.mxu0 0.0
        %922 = vmatpush1.msra.mxu0 0.0
        %923 = vmatprep.subr.mxu0 0.0
        %924 = vmatpush1.msra.mxu0 0.0
        %925 = vmatprep.subr.mxu0 0.0
        %926 = vmatpush1.msra.mxu0 0.0
        %927 = vmatprep.subr.mxu0 0.0
        %928 = vmatpush1.msra.mxu0 0.0
        %929 = vmatprep.subr.mxu0 0.0
        %930 = vmatpush1.msra.mxu0 0.0
        %931 = vmatprep.subr.mxu0 0.0
        %932 = vmatpush1.msra.mxu0 0.0
        %933 = vmatprep.subr.mxu0 0.0
        %934 = vmatpush1.msra.mxu0 0.0
        %935 = vmatprep.subr.mxu0 0.0
        %936 = vmatpush1.msra.mxu0 0.0
        %937 = vmatprep.subr.mxu0 0.0
        %938 = vmatpush1.msra.mxu0 0.0
        %939 = vmatprep.subr.mxu0 0.0
        %940 = vmatpush1.msra.mxu0 0.0
        %941 = vmatprep.subr.mxu0 0.0
        %942 = vmatpush1.msra.mxu0 0.0
        %943 = vmatprep.subr.mxu0 0.0
        %944 = vmatpush1.msra.mxu0 0.0
        %945 = vmatprep.subr.mxu0 0.0
        %946 = vmatpush1.msra.mxu0 0.0
        %947 = vmatprep.subr.mxu0 0.0
        %948 = vmatpush1.msra.mxu0 0.0
        %949 = vmatprep.subr.mxu0 0.0
        %950 = vmatpush1.msra.mxu0 0.0
        %951 = vmatprep.subr.mxu0 0.0
        %952 = vmatpush1.msra.mxu0 0.0
        %953 = vmatprep.subr.mxu0 0.0
        %954 = vmatpush1.msra.mxu0 0.0
        %955 = vmatprep.subr.mxu0 0.0
        %956 = vmatpush1.msra.mxu0 0.0
        %957 = vmatprep.subr.mxu0 0.0
        %958 = vmatpush1.msra.mxu0 0.0
        %959 = vmatprep.subr.mxu0 0.0
        %960 = vmatpush1.msra.mxu0 0.0
        %961 = vmatprep.subr.mxu0 0.0
        %962 = vmatpush1.msra.mxu0 0.0
        %963 = vmatprep.mubr.f32.mxu0 0.0
        %964 = vmatmul.mubr.f32.gmra.mrb[0].mxu0 %v577
        %v965 = vpop.f32.mrb[0].mxu0
        %v966 = vadd.f32 0.0, %v965
        %v967 = vpop.f32.mrb[0].mxu0
        %v968 = vadd.f32 0.0, %v967
        %969 = vdwg.mxu0
        %970 = vmatprep.subr.mxu0 %v564
        %971 = vmatpush1.msra.mxu0 %v563
        %972 = vmatprep.subr.mxu0 %v601
        %973 = vmatpush1.msra.mxu0 %v599
        %974 = vmatprep.subr.mxu0 0.0
        %975 = vmatpush1.msra.mxu0 0.0
        %976 = vmatprep.subr.mxu0 0.0
        %977 = vmatpush1.msra.mxu0 0.0
        %978 = vmatprep.subr.mxu0 0.0
        %979 = vmatpush1.msra.mxu0 0.0
        %980 = vmatprep.subr.mxu0 0.0
        %981 = vmatpush1.msra.mxu0 0.0
        %982 = vmatprep.subr.mxu0 0.0
        %983 = vmatpush1.msra.mxu0 0.0
        %984 = vmatprep.subr.mxu0 0.0
        %985 = vmatpush1.msra.mxu0 0.0
        %986 = vmatprep.subr.mxu0 0.0
        %987 = vmatpush1.msra.mxu0 0.0
        %988 = vmatprep.subr.mxu0 0.0
        %989 = vmatpush1.msra.mxu0 0.0
        %990 = vmatprep.subr.mxu0 0.0
        %991 = vmatpush1.msra.mxu0 0.0
        %992 = vmatprep.subr.mxu0 0.0
        %993 = vmatpush1.msra.mxu0 0.0
        %994 = vmatprep.subr.mxu0 0.0
        %995 = vmatpush1.msra.mxu0 0.0
        %996 = vmatprep.subr.mxu0 0.0
        %997 = vmatpush1.msra.mxu0 0.0
        %998 = vmatprep.subr.mxu0 0.0
        %999 = vmatpush1.msra.mxu0 0.0
        %1000 = vmatprep.subr.mxu0 0.0
        %1001 = vmatpush1.msra.mxu0 0.0
        %1002 = vmatprep.subr.mxu0 0.0
        %1003 = vmatpush1.msra.mxu0 0.0
        %1004 = vmatprep.subr.mxu0 0.0
        %1005 = vmatpush1.msra.mxu0 0.0
        %1006 = vmatprep.subr.mxu0 0.0
        %1007 = vmatpush1.msra.mxu0 0.0
        %1008 = vmatprep.subr.mxu0 0.0
        %1009 = vmatpush1.msra.mxu0 0.0
        %1010 = vmatprep.subr.mxu0 0.0
        %1011 = vmatpush1.msra.mxu0 0.0
        %1012 = vmatprep.subr.mxu0 0.0
        %1013 = vmatpush1.msra.mxu0 0.0
        %1014 = vmatprep.subr.mxu0 0.0
        %1015 = vmatpush1.msra.mxu0 0.0
        %1016 = vmatprep.subr.mxu0 0.0
        %1017 = vmatpush1.msra.mxu0 0.0
        %1018 = vmatprep.subr.mxu0 0.0
        %1019 = vmatpush1.msra.mxu0 0.0
        %1020 = vmatprep.subr.mxu0 0.0
        %1021 = vmatpush1.msra.mxu0 0.0
        %1022 = vmatprep.subr.mxu0 0.0
        %1023 = vmatpush1.msra.mxu0 0.0
        %1024 = vmatprep.subr.mxu0 0.0
        %1025 = vmatpush1.msra.mxu0 0.0
        %1026 = vmatprep.subr.mxu0 0.0
        %1027 = vmatpush1.msra.mxu0 0.0
        %1028 = vmatprep.subr.mxu0 0.0
        %1029 = vmatpush1.msra.mxu0 0.0
        %1030 = vmatprep.subr.mxu0 0.0
        %1031 = vmatpush1.msra.mxu0 0.0
        %1032 = vmatprep.subr.mxu0 0.0
        %1033 = vmatpush1.msra.mxu0 0.0
        %1034 = vmatprep.mubr.f32.mxu0 0.0
        %1035 = vmatmul.mubr.f32.gmra.mrb[0].mxu0 %v577
        %v1036 = vpop.f32.mrb[0].mxu0
        %v1037 = vadd.f32 0.0, %v1036
        %v1038 = vpop.f32.mrb[0].mxu0
        %v1039 = vadd.f32 0.0, %v1038
        %1040 = vdwg.mxu0
        %1041 = vmatprep.subr.mxu0 %v566
        %1042 = vmatpush1.msra.mxu0 %v565
        %1043 = vmatprep.subr.mxu0 %v605
        %1044 = vmatpush1.msra.mxu0 %v603
        %1045 = vmatprep.subr.mxu0 0.0
        %1046 = vmatpush1.msra.mxu0 0.0
        %1047 = vmatprep.subr.mxu0 0.0
        %1048 = vmatpush1.msra.mxu0 0.0
        %1049 = vmatprep.subr.mxu0 0.0
        %1050 = vmatpush1.msra.mxu0 0.0
        %1051 = vmatprep.subr.mxu0 0.0
        %1052 = vmatpush1.msra.mxu0 0.0
        %1053 = vmatprep.subr.mxu0 0.0
        %1054 = vmatpush1.msra.mxu0 0.0
        %1055 = vmatprep.subr.mxu0 0.0
        %1056 = vmatpush1.msra.mxu0 0.0
        %1057 = vmatprep.subr.mxu0 0.0
        %1058 = vmatpush1.msra.mxu0 0.0
        %1059 = vmatprep.subr.mxu0 0.0
        %1060 = vmatpush1.msra.mxu0 0.0
        %1061 = vmatprep.subr.mxu0 0.0
        %1062 = vmatpush1.msra.mxu0 0.0
        %1063 = vmatprep.subr.mxu0 0.0
        %1064 = vmatpush1.msra.mxu0 0.0
        %1065 = vmatprep.subr.mxu0 0.0
        %1066 = vmatpush1.msra.mxu0 0.0
        %1067 = vmatprep.subr.mxu0 0.0
        %1068 = vmatpush1.msra.mxu0 0.0
        %1069 = vmatprep.subr.mxu0 0.0
        %1070 = vmatpush1.msra.mxu0 0.0
        %1071 = vmatprep.subr.mxu0 0.0
        %1072 = vmatpush1.msra.mxu0 0.0
        %1073 = vmatprep.subr.mxu0 0.0
        %1074 = vmatpush1.msra.mxu0 0.0
        %1075 = vmatprep.subr.mxu0 0.0
        %1076 = vmatpush1.msra.mxu0 0.0
        %1077 = vmatprep.subr.mxu0 0.0
        %1078 = vmatpush1.msra.mxu0 0.0
        %1079 = vmatprep.subr.mxu0 0.0
        %1080 = vmatpush1.msra.mxu0 0.0
        %1081 = vmatprep.subr.mxu0 0.0
        %1082 = vmatpush1.msra.mxu0 0.0
        %1083 = vmatprep.subr.mxu0 0.0
        %1084 = vmatpush1.msra.mxu0 0.0
        %1085 = vmatprep.subr.mxu0 0.0
        %1086 = vmatpush1.msra.mxu0 0.0
        %1087 = vmatprep.subr.mxu0 0.0
        %1088 = vmatpush1.msra.mxu0 0.0
        %1089 = vmatprep.subr.mxu0 0.0
        %1090 = vmatpush1.msra.mxu0 0.0
        %1091 = vmatprep.subr.mxu0 0.0
        %1092 = vmatpush1.msra.mxu0 0.0
        %1093 = vmatprep.subr.mxu0 0.0
        %1094 = vmatpush1.msra.mxu0 0.0
        %1095 = vmatprep.subr.mxu0 0.0
        %1096 = vmatpush1.msra.mxu0 0.0
        %1097 = vmatprep.subr.mxu0 0.0
        %1098 = vmatpush1.msra.mxu0 0.0
        %1099 = vmatprep.subr.mxu0 0.0
        %1100 = vmatpush1.msra.mxu0 0.0
        %1101 = vmatprep.subr.mxu0 0.0
        %1102 = vmatpush1.msra.mxu0 0.0
        %1103 = vmatprep.subr.mxu0 0.0
        %1104 = vmatpush1.msra.mxu0 0.0
        %1105 = vmatprep.mubr.f32.mxu0 0.0
        %1106 = vmatmul.mubr.f32.gmra.mrb[0].mxu0 %v577
        %v1107 = vpop.f32.mrb[0].mxu0
        %v1108 = vadd.f32 0.0, %v1107
        %v1109 = vpop.f32.mrb[0].mxu0
        %v1110 = vadd.f32 0.0, %v1109
        %1111 = vdwg.mxu0
        %1112 = vmatprep.subr.mxu0 %v568
        %1113 = vmatpush1.msra.mxu0 %v567
        %1114 = vmatprep.subr.mxu0 %v609
        %1115 = vmatpush1.msra.mxu0 %v607
        %1116 = vmatprep.subr.mxu0 0.0
        %1117 = vmatpush1.msra.mxu0 0.0
        %1118 = vmatprep.subr.mxu0 0.0
        %1119 = vmatpush1.msra.mxu0 0.0
        %1120 = vmatprep.subr.mxu0 0.0
        %1121 = vmatpush1.msra.mxu0 0.0
        %1122 = vmatprep.subr.mxu0 0.0
        %1123 = vmatpush1.msra.mxu0 0.0
        %1124 = vmatprep.subr.mxu0 0.0
        %1125 = vmatpush1.msra.mxu0 0.0
        %1126 = vmatprep.subr.mxu0 0.0
        %1127 = vmatpush1.msra.mxu0 0.0
        %1128 = vmatprep.subr.mxu0 0.0
        %1129 = vmatpush1.msra.mxu0 0.0
        %1130 = vmatprep.subr.mxu0 0.0
        %1131 = vmatpush1.msra.mxu0 0.0
        %1132 = vmatprep.subr.mxu0 0.0
        %1133 = vmatpush1.msra.mxu0 0.0
        %1134 = vmatprep.subr.mxu0 0.0
        %1135 = vmatpush1.msra.mxu0 0.0
        %1136 = vmatprep.subr.mxu0 0.0
        %1137 = vmatpush1.msra.mxu0 0.0
        %1138 = vmatprep.subr.mxu0 0.0
        %1139 = vmatpush1.msra.mxu0 0.0
        %1140 = vmatprep.subr.mxu0 0.0
        %1141 = vmatpush1.msra.mxu0 0.0
        %1142 = vmatprep.subr.mxu0 0.0
        %1143 = vmatpush1.msra.mxu0 0.0
        %1144 = vmatprep.subr.mxu0 0.0
        %1145 = vmatpush1.msra.mxu0 0.0
        %1146 = vmatprep.subr.mxu0 0.0
        %1147 = vmatpush1.msra.mxu0 0.0
        %1148 = vmatprep.subr.mxu0 0.0
        %1149 = vmatpush1.msra.mxu0 0.0
        %1150 = vmatprep.subr.mxu0 0.0
        %1151 = vmatpush1.msra.mxu0 0.0
        %1152 = vmatprep.subr.mxu0 0.0
        %1153 = vmatpush1.msra.mxu0 0.0
        %1154 = vmatprep.subr.mxu0 0.0
        %1155 = vmatpush1.msra.mxu0 0.0
        %1156 = vmatprep.subr.mxu0 0.0
        %1157 = vmatpush1.msra.mxu0 0.0
        %1158 = vmatprep.subr.mxu0 0.0
        %1159 = vmatpush1.msra.mxu0 0.0
        %1160 = vmatprep.subr.mxu0 0.0
        %1161 = vmatpush1.msra.mxu0 0.0
        %1162 = vmatprep.subr.mxu0 0.0
        %1163 = vmatpush1.msra.mxu0 0.0
        %1164 = vmatprep.subr.mxu0 0.0
        %1165 = vmatpush1.msra.mxu0 0.0
        %1166 = vmatprep.subr.mxu0 0.0
        %1167 = vmatpush1.msra.mxu0 0.0
        %1168 = vmatprep.subr.mxu0 0.0
        %1169 = vmatpush1.msra.mxu0 0.0
        %1170 = vmatprep.subr.mxu0 0.0
        %1171 = vmatpush1.msra.mxu0 0.0
        %1172 = vmatprep.subr.mxu0 0.0
        %1173 = vmatpush1.msra.mxu0 0.0
        %1174 = vmatprep.subr.mxu0 0.0
        %1175 = vmatpush1.msra.mxu0 0.0
        %1176 = vmatprep.mubr.f32.mxu0 0.0
        %1177 = vmatmul.mubr.f32.gmra.mrb[0].mxu0 %v577
        %v1178 = vpop.f32.mrb[0].mxu0
        %v1179 = vadd.f32 0.0, %v1178
        %v1180 = vpop.f32.mrb[0].mxu0
        %v1181 = vadd.f32 0.0, %v1180
        %1182 = vdwg.mxu0
        %1183 = vmatprep.subr.mxu0 %v570
        %1184 = vmatpush1.msra.mxu0 %v569
        %1185 = vmatprep.subr.mxu0 %v613
        %1186 = vmatpush1.msra.mxu0 %v611
        %1187 = vmatprep.subr.mxu0 0.0
        %1188 = vmatpush1.msra.mxu0 0.0
        %1189 = vmatprep.subr.mxu0 0.0
        %1190 = vmatpush1.msra.mxu0 0.0
        %1191 = vmatprep.subr.mxu0 0.0
        %1192 = vmatpush1.msra.mxu0 0.0
        %1193 = vmatprep.subr.mxu0 0.0
        %1194 = vmatpush1.msra.mxu0 0.0
        %1195 = vmatprep.subr.mxu0 0.0
        %1196 = vmatpush1.msra.mxu0 0.0
        %1197 = vmatprep.subr.mxu0 0.0
        %1198 = vmatpush1.msra.mxu0 0.0
        %1199 = vmatprep.subr.mxu0 0.0
        %1200 = vmatpush1.msra.mxu0 0.0
        %1201 = vmatprep.subr.mxu0 0.0
        %1202 = vmatpush1.msra.mxu0 0.0
        %1203 = vmatprep.subr.mxu0 0.0
        %1204 = vmatpush1.msra.mxu0 0.0
        %1205 = vmatprep.subr.mxu0 0.0
        %1206 = vmatpush1.msra.mxu0 0.0
        %1207 = vmatprep.subr.mxu0 0.0
        %1208 = vmatpush1.msra.mxu0 0.0
        %1209 = vmatprep.subr.mxu0 0.0
        %1210 = vmatpush1.msra.mxu0 0.0
        %1211 = vmatprep.subr.mxu0 0.0
        %1212 = vmatpush1.msra.mxu0 0.0
        %1213 = vmatprep.subr.mxu0 0.0
        %1214 = vmatpush1.msra.mxu0 0.0
        %1215 = vmatprep.subr.mxu0 0.0
        %1216 = vmatpush1.msra.mxu0 0.0
        %1217 = vmatprep.subr.mxu0 0.0
        %1218 = vmatpush1.msra.mxu0 0.0
        %1219 = vmatprep.subr.mxu0 0.0
        %1220 = vmatpush1.msra.mxu0 0.0
        %1221 = vmatprep.subr.mxu0 0.0
        %1222 = vmatpush1.msra.mxu0 0.0
        %1223 = vmatprep.subr.mxu0 0.0
        %1224 = vmatpush1.msra.mxu0 0.0
        %1225 = vmatprep.subr.mxu0 0.0
        %1226 = vmatpush1.msra.mxu0 0.0
        %1227 = vmatprep.subr.mxu0 0.0
        %1228 = vmatpush1.msra.mxu0 0.0
        %1229 = vmatprep.subr.mxu0 0.0
        %1230 = vmatpush1.msra.mxu0 0.0
        %1231 = vmatprep.subr.mxu0 0.0
        %1232 = vmatpush1.msra.mxu0 0.0
        %1233 = vmatprep.subr.mxu0 0.0
        %1234 = vmatpush1.msra.mxu0 0.0
        %1235 = vmatprep.subr.mxu0 0.0
        %1236 = vmatpush1.msra.mxu0 0.0
        %1237 = vmatprep.subr.mxu0 0.0
        %1238 = vmatpush1.msra.mxu0 0.0
        %1239 = vmatprep.subr.mxu0 0.0
        %1240 = vmatpush1.msra.mxu0 0.0
        %1241 = vmatprep.subr.mxu0 0.0
        %1242 = vmatpush1.msra.mxu0 0.0
        %1243 = vmatprep.subr.mxu0 0.0
        %1244 = vmatpush1.msra.mxu0 0.0
        %1245 = vmatprep.subr.mxu0 0.0
        %1246 = vmatpush1.msra.mxu0 0.0
        %1247 = vmatprep.mubr.f32.mxu0 0.0
        %1248 = vmatmul.mubr.f32.gmra.mrb[0].mxu0 %v577
        %v1249 = vpop.f32.mrb[0].mxu0
        %v1250 = vadd.f32 0.0, %v1249
        %v1251 = vpop.f32.mrb[0].mxu0
        %v1252 = vadd.f32 0.0, %v1251
        %1253 = vdwg.mxu0
        %v1255 = vsel %vm575, %v572, 0
        %v1257 = vsel %vm551, %v531, 0
        %1259 = vmatprep.subr.mxu0 %v553
        %1260 = vmatpush1.msra.mxu0 %v552
        %1261 = vmatprep.subr.mxu0 %v579
        %1262 = vmatpush1.msra.mxu0 %v1257
        %1263 = vmatprep.subr.mxu0 0.0
        %1264 = vmatpush1.msra.mxu0 0.0
        %1265 = vmatprep.subr.mxu0 0.0
        %1266 = vmatpush1.msra.mxu0 0.0
        %1267 = vmatprep.subr.mxu0 0.0
        %1268 = vmatpush1.msra.mxu0 0.0
        %1269 = vmatprep.subr.mxu0 0.0
        %1270 = vmatpush1.msra.mxu0 0.0
        %1271 = vmatprep.subr.mxu0 0.0
        %1272 = vmatpush1.msra.mxu0 0.0
        %1273 = vmatprep.subr.mxu0 0.0
        %1274 = vmatpush1.msra.mxu0 0.0
        %1275 = vmatprep.subr.mxu0 0.0
        %1276 = vmatpush1.msra.mxu0 0.0
        %1277 = vmatprep.subr.mxu0 0.0
        %1278 = vmatpush1.msra.mxu0 0.0
        %1279 = vmatprep.subr.mxu0 0.0
        %1280 = vmatpush1.msra.mxu0 0.0
        %1281 = vmatprep.subr.mxu0 0.0
        %1282 = vmatpush1.msra.mxu0 0.0
        %1283 = vmatprep.subr.mxu0 0.0
        %1284 = vmatpush1.msra.mxu0 0.0
        %1285 = vmatprep.subr.mxu0 0.0
        %1286 = vmatpush1.msra.mxu0 0.0
        %1287 = vmatprep.subr.mxu0 0.0
        %1288 = vmatpush1.msra.mxu0 0.0
        %1289 = vmatprep.subr.mxu0 0.0
        %1290 = vmatpush1.msra.mxu0 0.0
        %1291 = vmatprep.subr.mxu0 0.0
        %1292 = vmatpush1.msra.mxu0 0.0
        %1293 = vmatprep.subr.mxu0 0.0
        %1294 = vmatpush1.msra.mxu0 0.0
        %1295 = vmatprep.subr.mxu0 0.0
        %1296 = vmatpush1.msra.mxu0 0.0
        %1297 = vmatprep.subr.mxu0 0.0
        %1298 = vmatpush1.msra.mxu0 0.0
        %1299 = vmatprep.subr.mxu0 0.0
        %1300 = vmatpush1.msra.mxu0 0.0
        %1301 = vmatprep.subr.mxu0 0.0
        %1302 = vmatpush1.msra.mxu0 0.0
        %1303 = vmatprep.subr.mxu0 0.0
        %1304 = vmatpush1.msra.mxu0 0.0
        %1305 = vmatprep.subr.mxu0 0.0
        %1306 = vmatpush1.msra.mxu0 0.0
        %1307 = vmatprep.subr.mxu0 0.0
        %1308 = vmatpush1.msra.mxu0 0.0
        %1309 = vmatprep.subr.mxu0 0.0
        %1310 = vmatpush1.msra.mxu0 0.0
        %1311 = vmatprep.subr.mxu0 0.0
        %1312 = vmatpush1.msra.mxu0 0.0
        %1313 = vmatprep.subr.mxu0 0.0
        %1314 = vmatpush1.msra.mxu0 0.0
        %1315 = vmatprep.subr.mxu0 0.0
        %1316 = vmatpush1.msra.mxu0 0.0
        %1317 = vmatprep.subr.mxu0 0.0
        %1318 = vmatpush1.msra.mxu0 0.0
        %1319 = vmatprep.subr.mxu0 0.0
        %1320 = vmatpush1.msra.mxu0 0.0
        %1321 = vmatprep.subr.mxu0 0.0
        %1322 = vmatpush1.msra.mxu0 0.0
        %1323 = vmatprep.mubr.f32.mxu0 0.0
        %1324 = vmatmul.mubr.f32.gmra.mrb[0].mxu0 %v1255
        %v1325 = vpop.f32.mrb[0].mxu0
        %v1326 = vadd.f32 %v682, %v1325
        %v1327 = vpop.f32.mrb[0].mxu0
        %v1328 = vadd.f32 %v684, %v1327
        %1329 = vdwg.mxu0
        %1330 = vmatprep.subr.mxu0 %v555
        %1331 = vmatpush1.msra.mxu0 %v554
        %1332 = vmatprep.subr.mxu0 %v583
        %1333 = vmatpush1.msra.mxu0 %v581
        %1334 = vmatprep.subr.mxu0 0.0
        %1335 = vmatpush1.msra.mxu0 0.0
        %1336 = vmatprep.subr.mxu0 0.0
        %1337 = vmatpush1.msra.mxu0 0.0
        %1338 = vmatprep.subr.mxu0 0.0
        %1339 = vmatpush1.msra.mxu0 0.0
        %1340 = vmatprep.subr.mxu0 0.0
        %1341 = vmatpush1.msra.mxu0 0.0
        %1342 = vmatprep.subr.mxu0 0.0
        %1343 = vmatpush1.msra.mxu0 0.0
        %1344 = vmatprep.subr.mxu0 0.0
        %1345 = vmatpush1.msra.mxu0 0.0
        %1346 = vmatprep.subr.mxu0 0.0
        %1347 = vmatpush1.msra.mxu0 0.0
        %1348 = vmatprep.subr.mxu0 0.0
        %1349 = vmatpush1.msra.mxu0 0.0
        %1350 = vmatprep.subr.mxu0 0.0
        %1351 = vmatpush1.msra.mxu0 0.0
        %1352 = vmatprep.subr.mxu0 0.0
        %1353 = vmatpush1.msra.mxu0 0.0
        %1354 = vmatprep.subr.mxu0 0.0
        %1355 = vmatpush1.msra.mxu0 0.0
        %1356 = vmatprep.subr.mxu0 0.0
        %1357 = vmatpush1.msra.mxu0 0.0
        %1358 = vmatprep.subr.mxu0 0.0
        %1359 = vmatpush1.msra.mxu0 0.0
        %1360 = vmatprep.subr.mxu0 0.0
        %1361 = vmatpush1.msra.mxu0 0.0
        %1362 = vmatprep.subr.mxu0 0.0
        %1363 = vmatpush1.msra.mxu0 0.0
        %1364 = vmatprep.subr.mxu0 0.0
        %1365 = vmatpush1.msra.mxu0 0.0
        %1366 = vmatprep.subr.mxu0 0.0
        %1367 = vmatpush1.msra.mxu0 0.0
        %1368 = vmatprep.subr.mxu0 0.0
        %1369 = vmatpush1.msra.mxu0 0.0
        %1370 = vmatprep.subr.mxu0 0.0
        %1371 = vmatpush1.msra.mxu0 0.0
        %1372 = vmatprep.subr.mxu0 0.0
        %1373 = vmatpush1.msra.mxu0 0.0
        %1374 = vmatprep.subr.mxu0 0.0
        %1375 = vmatpush1.msra.mxu0 0.0
        %1376 = vmatprep.subr.mxu0 0.0
        %1377 = vmatpush1.msra.mxu0 0.0
        %1378 = vmatprep.subr.mxu0 0.0
        %1379 = vmatpush1.msra.mxu0 0.0
        %1380 = vmatprep.subr.mxu0 0.0
        %1381 = vmatpush1.msra.mxu0 0.0
        %1382 = vmatprep.subr.mxu0 0.0
        %1383 = vmatpush1.msra.mxu0 0.0
        %1384 = vmatprep.subr.mxu0 0.0
        %1385 = vmatpush1.msra.mxu0 0.0
        %1386 = vmatprep.subr.mxu0 0.0
        %1387 = vmatpush1.msra.mxu0 0.0
        %1388 = vmatprep.subr.mxu0 0.0
        %1389 = vmatpush1.msra.mxu0 0.0
        %1390 = vmatprep.subr.mxu0 0.0
        %1391 = vmatpush1.msra.mxu0 0.0
        %1392 = vmatprep.subr.mxu0 0.0
        %1393 = vmatpush1.msra.mxu0 0.0
        %1394 = vmatprep.mubr.f32.mxu0 0.0
        %1395 = vmatmul.mubr.f32.gmra.mrb[0].mxu0 %v1255
        %v1396 = vpop.f32.mrb[0].mxu0
        %v1397 = vadd.f32 %v753, %v1396
        %v1398 = vpop.f32.mrb[0].mxu0
        %v1399 = vadd.f32 %v755, %v1398
        %1400 = vdwg.mxu0
        %1401 = vmatprep.subr.mxu0 %v557
        %1402 = vmatpush1.msra.mxu0 %v556
        %1403 = vmatprep.subr.mxu0 %v587
        %1404 = vmatpush1.msra.mxu0 %v585
        %1405 = vmatprep.subr.mxu0 0.0
        %1406 = vmatpush1.msra.mxu0 0.0
        %1407 = vmatprep.subr.mxu0 0.0
        %1408 = vmatpush1.msra.mxu0 0.0
        %1409 = vmatprep.subr.mxu0 0.0
        %1410 = vmatpush1.msra.mxu0 0.0
        %1411 = vmatprep.subr.mxu0 0.0
        %1412 = vmatpush1.msra.mxu0 0.0
        %1413 = vmatprep.subr.mxu0 0.0
        %1414 = vmatpush1.msra.mxu0 0.0
        %1415 = vmatprep.subr.mxu0 0.0
        %1416 = vmatpush1.msra.mxu0 0.0
        %1417 = vmatprep.subr.mxu0 0.0
        %1418 = vmatpush1.msra.mxu0 0.0
        %1419 = vmatprep.subr.mxu0 0.0
        %1420 = vmatpush1.msra.mxu0 0.0
        %1421 = vmatprep.subr.mxu0 0.0
        %1422 = vmatpush1.msra.mxu0 0.0
        %1423 = vmatprep.subr.mxu0 0.0
        %1424 = vmatpush1.msra.mxu0 0.0
        %1425 = vmatprep.subr.mxu0 0.0
        %1426 = vmatpush1.msra.mxu0 0.0
        %1427 = vmatprep.subr.mxu0 0.0
        %1428 = vmatpush1.msra.mxu0 0.0
        %1429 = vmatprep.subr.mxu0 0.0
        %1430 = vmatpush1.msra.mxu0 0.0
        %1431 = vmatprep.subr.mxu0 0.0
        %1432 = vmatpush1.msra.mxu0 0.0
        %1433 = vmatprep.subr.mxu0 0.0
        %1434 = vmatpush1.msra.mxu0 0.0
        %1435 = vmatprep.subr.mxu0 0.0
        %1436 = vmatpush1.msra.mxu0 0.0
        %1437 = vmatprep.subr.mxu0 0.0
        %1438 = vmatpush1.msra.mxu0 0.0
        %1439 = vmatprep.subr.mxu0 0.0
        %1440 = vmatpush1.msra.mxu0 0.0
        %1441 = vmatprep.subr.mxu0 0.0
        %1442 = vmatpush1.msra.mxu0 0.0
        %1443 = vmatprep.subr.mxu0 0.0
        %1444 = vmatpush1.msra.mxu0 0.0
        %1445 = vmatprep.subr.mxu0 0.0
        %1446 = vmatpush1.msra.mxu0 0.0
        %1447 = vmatprep.subr.mxu0 0.0
        %1448 = vmatpush1.msra.mxu0 0.0
        %1449 = vmatprep.subr.mxu0 0.0
        %1450 = vmatpush1.msra.mxu0 0.0
        %1451 = vmatprep.subr.mxu0 0.0
        %1452 = vmatpush1.msra.mxu0 0.0
        %1453 = vmatprep.subr.mxu0 0.0
        %1454 = vmatpush1.msra.mxu0 0.0
        %1455 = vmatprep.subr.mxu0 0.0
        %1456 = vmatpush1.msra.mxu0 0.0
        %1457 = vmatprep.subr.mxu0 0.0
        %1458 = vmatpush1.msra.mxu0 0.0
        %1459 = vmatprep.subr.mxu0 0.0
        %1460 = vmatpush1.msra.mxu0 0.0
        %1461 = vmatprep.subr.mxu0 0.0
        %1462 = vmatpush1.msra.mxu0 0.0
        %1463 = vmatprep.subr.mxu0 0.0
        %1464 = vmatpush1.msra.mxu0 0.0
        %1465 = vmatprep.mubr.f32.mxu0 0.0
        %1466 = vmatmul.mubr.f32.gmra.mrb[0].mxu0 %v1255
        %v1467 = vpop.f32.mrb[0].mxu0
        %v1468 = vadd.f32 %v824, %v1467
        %v1469 = vpop.f32.mrb[0].mxu0
        %v1470 = vadd.f32 %v826, %v1469
        %1471 = vdwg.mxu0
        %1472 = vmatprep.subr.mxu0 %v559
        %1473 = vmatpush1.msra.mxu0 %v558
        %1474 = vmatprep.subr.mxu0 %v591
        %1475 = vmatpush1.msra.mxu0 %v589
        %1476 = vmatprep.subr.mxu0 0.0
        %1477 = vmatpush1.msra.mxu0 0.0
        %1478 = vmatprep.subr.mxu0 0.0
        %1479 = vmatpush1.msra.mxu0 0.0
        %1480 = vmatprep.subr.mxu0 0.0
        %1481 = vmatpush1.msra.mxu0 0.0
        %1482 = vmatprep.subr.mxu0 0.0
        %1483 = vmatpush1.msra.mxu0 0.0
        %1484 = vmatprep.subr.mxu0 0.0
        %1485 = vmatpush1.msra.mxu0 0.0
        %1486 = vmatprep.subr.mxu0 0.0
        %1487 = vmatpush1.msra.mxu0 0.0
        %1488 = vmatprep.subr.mxu0 0.0
        %1489 = vmatpush1.msra.mxu0 0.0
        %1490 = vmatprep.subr.mxu0 0.0
        %1491 = vmatpush1.msra.mxu0 0.0
        %1492 = vmatprep.subr.mxu0 0.0
        %1493 = vmatpush1.msra.mxu0 0.0
        %1494 = vmatprep.subr.mxu0 0.0
        %1495 = vmatpush1.msra.mxu0 0.0
        %1496 = vmatprep.subr.mxu0 0.0
        %1497 = vmatpush1.msra.mxu0 0.0
        %1498 = vmatprep.subr.mxu0 0.0
        %1499 = vmatpush1.msra.mxu0 0.0
        %1500 = vmatprep.subr.mxu0 0.0
        %1501 = vmatpush1.msra.mxu0 0.0
        %1502 = vmatprep.subr.mxu0 0.0
        %1503 = vmatpush1.msra.mxu0 0.0
        %1504 = vmatprep.subr.mxu0 0.0
        %1505 = vmatpush1.msra.mxu0 0.0
        %1506 = vmatprep.subr.mxu0 0.0
        %1507 = vmatpush1.msra.mxu0 0.0
        %1508 = vmatprep.subr.mxu0 0.0
        %1509 = vmatpush1.msra.mxu0 0.0
        %1510 = vmatprep.subr.mxu0 0.0
        %1511 = vmatpush1.msra.mxu0 0.0
        %1512 = vmatprep.subr.mxu0 0.0
        %1513 = vmatpush1.msra.mxu0 0.0
        %1514 = vmatprep.subr.mxu0 0.0
        %1515 = vmatpush1.msra.mxu0 0.0
        %1516 = vmatprep.subr.mxu0 0.0
        %1517 = vmatpush1.msra.mxu0 0.0
        %1518 = vmatprep.subr.mxu0 0.0
        %1519 = vmatpush1.msra.mxu0 0.0
        %1520 = vmatprep.subr.mxu0 0.0
        %1521 = vmatpush1.msra.mxu0 0.0
        %1522 = vmatprep.subr.mxu0 0.0
        %1523 = vmatpush1.msra.mxu0 0.0
        %1524 = vmatprep.subr.mxu0 0.0
        %1525 = vmatpush1.msra.mxu0 0.0
        %1526 = vmatprep.subr.mxu0 0.0
        %1527 = vmatpush1.msra.mxu0 0.0
        %1528 = vmatprep.subr.mxu0 0.0
        %1529 = vmatpush1.msra.mxu0 0.0
        %1530 = vmatprep.subr.mxu0 0.0
        %1531 = vmatpush1.msra.mxu0 0.0
        %1532 = vmatprep.subr.mxu0 0.0
        %1533 = vmatpush1.msra.mxu0 0.0
        %1534 = vmatprep.subr.mxu0 0.0
        %1535 = vmatpush1.msra.mxu0 0.0
        %1536 = vmatprep.mubr.f32.mxu0 0.0
        %1537 = vmatmul.mubr.f32.gmra.mrb[0].mxu0 %v1255
        %v1538 = vpop.f32.mrb[0].mxu0
        %v1539 = vadd.f32 %v895, %v1538
        %v1540 = vpop.f32.mrb[0].mxu0
        %v1541 = vadd.f32 %v897, %v1540
        %1542 = vdwg.mxu0
        %1543 = vmatprep.subr.mxu0 %v561
        %1544 = vmatpush1.msra.mxu0 %v560
        %1545 = vmatprep.subr.mxu0 %v595
        %1546 = vmatpush1.msra.mxu0 %v593
        %1547 = vmatprep.subr.mxu0 0.0
        %1548 = vmatpush1.msra.mxu0 0.0
        %1549 = vmatprep.subr.mxu0 0.0
        %1550 = vmatpush1.msra.mxu0 0.0
        %1551 = vmatprep.subr.mxu0 0.0
        %1552 = vmatpush1.msra.mxu0 0.0
        %1553 = vmatprep.subr.mxu0 0.0
        %1554 = vmatpush1.msra.mxu0 0.0
        %1555 = vmatprep.subr.mxu0 0.0
        %1556 = vmatpush1.msra.mxu0 0.0
        %1557 = vmatprep.subr.mxu0 0.0
        %1558 = vmatpush1.msra.mxu0 0.0
        %1559 = vmatprep.subr.mxu0 0.0
        %1560 = vmatpush1.msra.mxu0 0.0
        %1561 = vmatprep.subr.mxu0 0.0
        %1562 = vmatpush1.msra.mxu0 0.0
        %1563 = vmatprep.subr.mxu0 0.0
        %1564 = vmatpush1.msra.mxu0 0.0
        %1565 = vmatprep.subr.mxu0 0.0
        %1566 = vmatpush1.msra.mxu0 0.0
        %1567 = vmatprep.subr.mxu0 0.0
        %1568 = vmatpush1.msra.mxu0 0.0
        %1569 = vmatprep.subr.mxu0 0.0
        %1570 = vmatpush1.msra.mxu0 0.0
        %1571 = vmatprep.subr.mxu0 0.0
        %1572 = vmatpush1.msra.mxu0 0.0
        %1573 = vmatprep.subr.mxu0 0.0
        %1574 = vmatpush1.msra.mxu0 0.0
        %1575 = vmatprep.subr.mxu0 0.0
        %1576 = vmatpush1.msra.mxu0 0.0
        %1577 = vmatprep.subr.mxu0 0.0
        %1578 = vmatpush1.msra.mxu0 0.0
        %1579 = vmatprep.subr.mxu0 0.0
        %1580 = vmatpush1.msra.mxu0 0.0
        %1581 = vmatprep.subr.mxu0 0.0
        %1582 = vmatpush1.msra.mxu0 0.0
        %1583 = vmatprep.subr.mxu0 0.0
        %1584 = vmatpush1.msra.mxu0 0.0
        %1585 = vmatprep.subr.mxu0 0.0
        %1586 = vmatpush1.msra.mxu0 0.0
        %1587 = vmatprep.subr.mxu0 0.0
        %1588 = vmatpush1.msra.mxu0 0.0
        %1589 = vmatprep.subr.mxu0 0.0
        %1590 = vmatpush1.msra.mxu0 0.0
        %1591 = vmatprep.subr.mxu0 0.0
        %1592 = vmatpush1.msra.mxu0 0.0
        %1593 = vmatprep.subr.mxu0 0.0
        %1594 = vmatpush1.msra.mxu0 0.0
        %1595 = vmatprep.subr.mxu0 0.0
        %1596 = vmatpush1.msra.mxu0 0.0
        %1597 = vmatprep.subr.mxu0 0.0
        %1598 = vmatpush1.msra.mxu0 0.0
        %1599 = vmatprep.subr.mxu0 0.0
        %1600 = vmatpush1.msra.mxu0 0.0
        %1601 = vmatprep.subr.mxu0 0.0
        %1602 = vmatpush1.msra.mxu0 0.0
        %1603 = vmatprep.subr.mxu0 0.0
        %1604 = vmatpush1.msra.mxu0 0.0
        %1605 = vmatprep.subr.mxu0 0.0
        %1606 = vmatpush1.msra.mxu0 0.0
        %1607 = vmatprep.mubr.f32.mxu0 0.0
        %1608 = vmatmul.mubr.f32.gmra.mrb[0].mxu0 %v1255
        %v1609 = vpop.f32.mrb[0].mxu0
        %v1610 = vadd.f32 %v966, %v1609
        %v1611 = vpop.f32.mrb[0].mxu0
        %v1612 = vadd.f32 %v968, %v1611
        %1613 = vdwg.mxu0
        %1614 = vmatprep.subr.mxu0 %v563
        %1615 = vmatpush1.msra.mxu0 %v562
        %1616 = vmatprep.subr.mxu0 %v599
        %1617 = vmatpush1.msra.mxu0 %v597
        %1618 = vmatprep.subr.mxu0 0.0
        %1619 = vmatpush1.msra.mxu0 0.0
        %1620 = vmatprep.subr.mxu0 0.0
        %1621 = vmatpush1.msra.mxu0 0.0
        %1622 = vmatprep.subr.mxu0 0.0
        %1623 = vmatpush1.msra.mxu0 0.0
        %1624 = vmatprep.subr.mxu0 0.0
        %1625 = vmatpush1.msra.mxu0 0.0
        %1626 = vmatprep.subr.mxu0 0.0
        %1627 = vmatpush1.msra.mxu0 0.0
        %1628 = vmatprep.subr.mxu0 0.0
        %1629 = vmatpush1.msra.mxu0 0.0
        %1630 = vmatprep.subr.mxu0 0.0
        %1631 = vmatpush1.msra.mxu0 0.0
        %1632 = vmatprep.subr.mxu0 0.0
        %1633 = vmatpush1.msra.mxu0 0.0
        %1634 = vmatprep.subr.mxu0 0.0
        %1635 = vmatpush1.msra.mxu0 0.0
        %1636 = vmatprep.subr.mxu0 0.0
        %1637 = vmatpush1.msra.mxu0 0.0
        %1638 = vmatprep.subr.mxu0 0.0
        %1639 = vmatpush1.msra.mxu0 0.0
        %1640 = vmatprep.subr.mxu0 0.0
        %1641 = vmatpush1.msra.mxu0 0.0
        %1642 = vmatprep.subr.mxu0 0.0
        %1643 = vmatpush1.msra.mxu0 0.0
        %1644 = vmatprep.subr.mxu0 0.0
        %1645 = vmatpush1.msra.mxu0 0.0
        %1646 = vmatprep.subr.mxu0 0.0
        %1647 = vmatpush1.msra.mxu0 0.0
        %1648 = vmatprep.subr.mxu0 0.0
        %1649 = vmatpush1.msra.mxu0 0.0
        %1650 = vmatprep.subr.mxu0 0.0
        %1651 = vmatpush1.msra.mxu0 0.0
        %1652 = vmatprep.subr.mxu0 0.0
        %1653 = vmatpush1.msra.mxu0 0.0
        %1654 = vmatprep.subr.mxu0 0.0
        %1655 = vmatpush1.msra.mxu0 0.0
        %1656 = vmatprep.subr.mxu0 0.0
        %1657 = vmatpush1.msra.mxu0 0.0
        %1658 = vmatprep.subr.mxu0 0.0
        %1659 = vmatpush1.msra.mxu0 0.0
        %1660 = vmatprep.subr.mxu0 0.0
        %1661 = vmatpush1.msra.mxu0 0.0
        %1662 = vmatprep.subr.mxu0 0.0
        %1663 = vmatpush1.msra.mxu0 0.0
        %1664 = vmatprep.subr.mxu0 0.0
        %1665 = vmatpush1.msra.mxu0 0.0
        %1666 = vmatprep.subr.mxu0 0.0
        %1667 = vmatpush1.msra.mxu0 0.0
        %1668 = vmatprep.subr.mxu0 0.0
        %1669 = vmatpush1.msra.mxu0 0.0
        %1670 = vmatprep.subr.mxu0 0.0
        %1671 = vmatpush1.msra.mxu0 0.0
        %1672 = vmatprep.subr.mxu0 0.0
        %1673 = vmatpush1.msra.mxu0 0.0
        %1674 = vmatprep.subr.mxu0 0.0
        %1675 = vmatpush1.msra.mxu0 0.0
        %1676 = vmatprep.subr.mxu0 0.0
        %1677 = vmatpush1.msra.mxu0 0.0
        %1678 = vmatprep.mubr.f32.mxu0 0.0
        %1679 = vmatmul.mubr.f32.gmra.mrb[0].mxu0 %v1255
        %v1680 = vpop.f32.mrb[0].mxu0
        %v1681 = vadd.f32 %v1037, %v1680
        %v1682 = vpop.f32.mrb[0].mxu0
        %v1683 = vadd.f32 %v1039, %v1682
        %1684 = vdwg.mxu0
        %1685 = vmatprep.subr.mxu0 %v565
        %1686 = vmatpush1.msra.mxu0 %v564
        %1687 = vmatprep.subr.mxu0 %v603
        %1688 = vmatpush1.msra.mxu0 %v601
        %1689 = vmatprep.subr.mxu0 0.0
        %1690 = vmatpush1.msra.mxu0 0.0
        %1691 = vmatprep.subr.mxu0 0.0
        %1692 = vmatpush1.msra.mxu0 0.0
        %1693 = vmatprep.subr.mxu0 0.0
        %1694 = vmatpush1.msra.mxu0 0.0
        %1695 = vmatprep.subr.mxu0 0.0
        %1696 = vmatpush1.msra.mxu0 0.0
        %1697 = vmatprep.subr.mxu0 0.0
        %1698 = vmatpush1.msra.mxu0 0.0
        %1699 = vmatprep.subr.mxu0 0.0
        %1700 = vmatpush1.msra.mxu0 0.0
        %1701 = vmatprep.subr.mxu0 0.0
        %1702 = vmatpush1.msra.mxu0 0.0
        %1703 = vmatprep.subr.mxu0 0.0
        %1704 = vmatpush1.msra.mxu0 0.0
        %1705 = vmatprep.subr.mxu0 0.0
        %1706 = vmatpush1.msra.mxu0 0.0
        %1707 = vmatprep.subr.mxu0 0.0
        %1708 = vmatpush1.msra.mxu0 0.0
        %1709 = vmatprep.subr.mxu0 0.0
        %1710 = vmatpush1.msra.mxu0 0.0
        %1711 = vmatprep.subr.mxu0 0.0
        %1712 = vmatpush1.msra.mxu0 0.0
        %1713 = vmatprep.subr.mxu0 0.0
        %1714 = vmatpush1.msra.mxu0 0.0
        %1715 = vmatprep.subr.mxu0 0.0
        %1716 = vmatpush1.msra.mxu0 0.0
        %1717 = vmatprep.subr.mxu0 0.0
        %1718 = vmatpush1.msra.mxu0 0.0
        %1719 = vmatprep.subr.mxu0 0.0
        %1720 = vmatpush1.msra.mxu0 0.0
        %1721 = vmatprep.subr.mxu0 0.0
        %1722 = vmatpush1.msra.mxu0 0.0
        %1723 = vmatprep.subr.mxu0 0.0
        %1724 = vmatpush1.msra.mxu0 0.0
        %1725 = vmatprep.subr.mxu0 0.0
        %1726 = vmatpush1.msra.mxu0 0.0
        %1727 = vmatprep.subr.mxu0 0.0
        %1728 = vmatpush1.msra.mxu0 0.0
        %1729 = vmatprep.subr.mxu0 0.0
        %1730 = vmatpush1.msra.mxu0 0.0
        %1731 = vmatprep.subr.mxu0 0.0
        %1732 = vmatpush1.msra.mxu0 0.0
        %1733 = vmatprep.subr.mxu0 0.0
        %1734 = vmatpush1.msra.mxu0 0.0
        %1735 = vmatprep.subr.mxu0 0.0
        %1736 = vmatpush1.msra.mxu0 0.0
        %1737 = vmatprep.subr.mxu0 0.0
        %1738 = vmatpush1.msra.mxu0 0.0
        %1739 = vmatprep.subr.mxu0 0.0
        %1740 = vmatpush1.msra.mxu0 0.0
        %1741 = vmatprep.subr.mxu0 0.0
        %1742 = vmatpush1.msra.mxu0 0.0
        %1743 = vmatprep.subr.mxu0 0.0
        %1744 = vmatpush1.msra.mxu0 0.0
        %1745 = vmatprep.subr.mxu0 0.0
        %1746 = vmatpush1.msra.mxu0 0.0
        %1747 = vmatprep.subr.mxu0 0.0
        %1748 = vmatpush1.msra.mxu0 0.0
        %1749 = vmatprep.mubr.f32.mxu0 0.0
        %1750 = vmatmul.mubr.f32.gmra.mrb[0].mxu0 %v1255
        %v1751 = vpop.f32.mrb[0].mxu0
        %v1752 = vadd.f32 %v1108, %v1751
        %v1753 = vpop.f32.mrb[0].mxu0
        %v1754 = vadd.f32 %v1110, %v1753
        %1755 = vdwg.mxu0
        %1756 = vmatprep.subr.mxu0 %v567
        %1757 = vmatpush1.msra.mxu0 %v566
        %1758 = vmatprep.subr.mxu0 %v607
        %1759 = vmatpush1.msra.mxu0 %v605
        %1760 = vmatprep.subr.mxu0 0.0
        %1761 = vmatpush1.msra.mxu0 0.0
        %1762 = vmatprep.subr.mxu0 0.0
        %1763 = vmatpush1.msra.mxu0 0.0
        %1764 = vmatprep.subr.mxu0 0.0
        %1765 = vmatpush1.msra.mxu0 0.0
        %1766 = vmatprep.subr.mxu0 0.0
        %1767 = vmatpush1.msra.mxu0 0.0
        %1768 = vmatprep.subr.mxu0 0.0
        %1769 = vmatpush1.msra.mxu0 0.0
        %1770 = vmatprep.subr.mxu0 0.0
        %1771 = vmatpush1.msra.mxu0 0.0
        %1772 = vmatprep.subr.mxu0 0.0
        %1773 = vmatpush1.msra.mxu0 0.0
        %1774 = vmatprep.subr.mxu0 0.0
        %1775 = vmatpush1.msra.mxu0 0.0
        %1776 = vmatprep.subr.mxu0 0.0
        %1777 = vmatpush1.msra.mxu0 0.0
        %1778 = vmatprep.subr.mxu0 0.0
        %1779 = vmatpush1.msra.mxu0 0.0
        %1780 = vmatprep.subr.mxu0 0.0
        %1781 = vmatpush1.msra.mxu0 0.0
        %1782 = vmatprep.subr.mxu0 0.0
        %1783 = vmatpush1.msra.mxu0 0.0
        %1784 = vmatprep.subr.mxu0 0.0
        %1785 = vmatpush1.msra.mxu0 0.0
        %1786 = vmatprep.subr.mxu0 0.0
        %1787 = vmatpush1.msra.mxu0 0.0
        %1788 = vmatprep.subr.mxu0 0.0
        %1789 = vmatpush1.msra.mxu0 0.0
        %1790 = vmatprep.subr.mxu0 0.0
        %1791 = vmatpush1.msra.mxu0 0.0
        %1792 = vmatprep.subr.mxu0 0.0
        %1793 = vmatpush1.msra.mxu0 0.0
        %1794 = vmatprep.subr.mxu0 0.0
        %1795 = vmatpush1.msra.mxu0 0.0
        %1796 = vmatprep.subr.mxu0 0.0
        %1797 = vmatpush1.msra.mxu0 0.0
        %1798 = vmatprep.subr.mxu0 0.0
        %1799 = vmatpush1.msra.mxu0 0.0
        %1800 = vmatprep.subr.mxu0 0.0
        %1801 = vmatpush1.msra.mxu0 0.0
        %1802 = vmatprep.subr.mxu0 0.0
        %1803 = vmatpush1.msra.mxu0 0.0
        %1804 = vmatprep.subr.mxu0 0.0
        %1805 = vmatpush1.msra.mxu0 0.0
        %1806 = vmatprep.subr.mxu0 0.0
        %1807 = vmatpush1.msra.mxu0 0.0
        %1808 = vmatprep.subr.mxu0 0.0
        %1809 = vmatpush1.msra.mxu0 0.0
        %1810 = vmatprep.subr.mxu0 0.0
        %1811 = vmatpush1.msra.mxu0 0.0
        %1812 = vmatprep.subr.mxu0 0.0
        %1813 = vmatpush1.msra.mxu0 0.0
        %1814 = vmatprep.subr.mxu0 0.0
        %1815 = vmatpush1.msra.mxu0 0.0
        %1816 = vmatprep.subr.mxu0 0.0
        %1817 = vmatpush1.msra.mxu0 0.0
        %1818 = vmatprep.subr.mxu0 0.0
        %1819 = vmatpush1.msra.mxu0 0.0
        %1820 = vmatprep.mubr.f32.mxu0 0.0
        %1821 = vmatmul.mubr.f32.gmra.mrb[0].mxu0 %v1255
        %v1822 = vpop.f32.mrb[0].mxu0
        %v1823 = vadd.f32 %v1179, %v1822
        %v1824 = vpop.f32.mrb[0].mxu0
        %v1825 = vadd.f32 %v1181, %v1824
        %1826 = vdwg.mxu0
        %1827 = vmatprep.subr.mxu0 %v569
        %1828 = vmatpush1.msra.mxu0 %v568
        %1829 = vmatprep.subr.mxu0 %v611
        %1830 = vmatpush1.msra.mxu0 %v609
        %1831 = vmatprep.subr.mxu0 0.0
        %1832 = vmatpush1.msra.mxu0 0.0
        %1833 = vmatprep.subr.mxu0 0.0
        %1834 = vmatpush1.msra.mxu0 0.0
        %1835 = vmatprep.subr.mxu0 0.0
        %1836 = vmatpush1.msra.mxu0 0.0
        %1837 = vmatprep.subr.mxu0 0.0
        %1838 = vmatpush1.msra.mxu0 0.0
        %1839 = vmatprep.subr.mxu0 0.0
        %1840 = vmatpush1.msra.mxu0 0.0
        %1841 = vmatprep.subr.mxu0 0.0
        %1842 = vmatpush1.msra.mxu0 0.0
        %1843 = vmatprep.subr.mxu0 0.0
        %1844 = vmatpush1.msra.mxu0 0.0
        %1845 = vmatprep.subr.mxu0 0.0
        %1846 = vmatpush1.msra.mxu0 0.0
        %1847 = vmatprep.subr.mxu0 0.0
        %1848 = vmatpush1.msra.mxu0 0.0
        %1849 = vmatprep.subr.mxu0 0.0
        %1850 = vmatpush1.msra.mxu0 0.0
        %1851 = vmatprep.subr.mxu0 0.0
        %1852 = vmatpush1.msra.mxu0 0.0
        %1853 = vmatprep.subr.mxu0 0.0
        %1854 = vmatpush1.msra.mxu0 0.0
        %1855 = vmatprep.subr.mxu0 0.0
        %1856 = vmatpush1.msra.mxu0 0.0
        %1857 = vmatprep.subr.mxu0 0.0
        %1858 = vmatpush1.msra.mxu0 0.0
        %1859 = vmatprep.subr.mxu0 0.0
        %1860 = vmatpush1.msra.mxu0 0.0
        %1861 = vmatprep.subr.mxu0 0.0
        %1862 = vmatpush1.msra.mxu0 0.0
        %1863 = vmatprep.subr.mxu0 0.0
        %1864 = vmatpush1.msra.mxu0 0.0
        %1865 = vmatprep.subr.mxu0 0.0
        %1866 = vmatpush1.msra.mxu0 0.0
        %1867 = vmatprep.subr.mxu0 0.0
        %1868 = vmatpush1.msra.mxu0 0.0
        %1869 = vmatprep.subr.mxu0 0.0
        %1870 = vmatpush1.msra.mxu0 0.0
        %1871 = vmatprep.subr.mxu0 0.0
        %1872 = vmatpush1.msra.mxu0 0.0
        %1873 = vmatprep.subr.mxu0 0.0
        %1874 = vmatpush1.msra.mxu0 0.0
        %1875 = vmatprep.subr.mxu0 0.0
        %1876 = vmatpush1.msra.mxu0 0.0
        %1877 = vmatprep.subr.mxu0 0.0
        %1878 = vmatpush1.msra.mxu0 0.0
        %1879 = vmatprep.subr.mxu0 0.0
        %1880 = vmatpush1.msra.mxu0 0.0
        %1881 = vmatprep.subr.mxu0 0.0
        %1882 = vmatpush1.msra.mxu0 0.0
        %1883 = vmatprep.subr.mxu0 0.0
        %1884 = vmatpush1.msra.mxu0 0.0
        %1885 = vmatprep.subr.mxu0 0.0
        %1886 = vmatpush1.msra.mxu0 0.0
        %1887 = vmatprep.subr.mxu0 0.0
        %1888 = vmatpush1.msra.mxu0 0.0
        %1889 = vmatprep.subr.mxu0 0.0
        %1890 = vmatpush1.msra.mxu0 0.0
        %1891 = vmatprep.mubr.f32.mxu0 0.0
        %1892 = vmatmul.mubr.f32.gmra.mrb[0].mxu0 %v1255
        %v1893 = vpop.f32.mrb[0].mxu0
        %v1894 = vadd.f32 %v1250, %v1893
        %v1895 = vpop.f32.mrb[0].mxu0
        %v1896 = vadd.f32 %v1252, %v1895
        %1897 = vdwg.mxu0
        %s1898 = scalar_lea.vmem [#allocation7], 16
        %v1899 = vld [vmem:[%s1898] sm:$0xff]
        %v1901 = vsel %vm575, %v1899, 0
        %v1903 = vsel %vm551, %v550, 0
        %1905 = vmatprep.subr.mxu0 %v555
        %1906 = vmatpush1.msra.mxu0 %v554
        %1907 = vmatprep.subr.mxu0 %v583
        %1908 = vmatpush1.msra.mxu0 %v581
        %1909 = vmatprep.subr.mxu0 0.0
        %1910 = vmatpush1.msra.mxu0 0.0
        %1911 = vmatprep.subr.mxu0 0.0
        %1912 = vmatpush1.msra.mxu0 0.0
        %1913 = vmatprep.subr.mxu0 0.0
        %1914 = vmatpush1.msra.mxu0 0.0
        %1915 = vmatprep.subr.mxu0 0.0
        %1916 = vmatpush1.msra.mxu0 0.0
        %1917 = vmatprep.subr.mxu0 0.0
        %1918 = vmatpush1.msra.mxu0 0.0
        %1919 = vmatprep.subr.mxu0 0.0
        %1920 = vmatpush1.msra.mxu0 0.0
        %1921 = vmatprep.subr.mxu0 0.0
        %1922 = vmatpush1.msra.mxu0 0.0
        %1923 = vmatprep.subr.mxu0 0.0
        %1924 = vmatpush1.msra.mxu0 0.0
        %1925 = vmatprep.subr.mxu0 0.0
        %1926 = vmatpush1.msra.mxu0 0.0
        %1927 = vmatprep.subr.mxu0 0.0
        %1928 = vmatpush1.msra.mxu0 0.0
        %1929 = vmatprep.subr.mxu0 0.0
        %1930 = vmatpush1.msra.mxu0 0.0
        %1931 = vmatprep.subr.mxu0 0.0
        %1932 = vmatpush1.msra.mxu0 0.0
        %1933 = vmatprep.subr.mxu0 0.0
        %1934 = vmatpush1.msra.mxu0 0.0
        %1935 = vmatprep.subr.mxu0 0.0
        %1936 = vmatpush1.msra.mxu0 0.0
        %1937 = vmatprep.subr.mxu0 0.0
        %1938 = vmatpush1.msra.mxu0 0.0
        %1939 = vmatprep.subr.mxu0 0.0
        %1940 = vmatpush1.msra.mxu0 0.0
        %1941 = vmatprep.subr.mxu0 0.0
        %1942 = vmatpush1.msra.mxu0 0.0
        %1943 = vmatprep.subr.mxu0 0.0
        %1944 = vmatpush1.msra.mxu0 0.0
        %1945 = vmatprep.subr.mxu0 0.0
        %1946 = vmatpush1.msra.mxu0 0.0
        %1947 = vmatprep.subr.mxu0 0.0
        %1948 = vmatpush1.msra.mxu0 0.0
        %1949 = vmatprep.subr.mxu0 0.0
        %1950 = vmatpush1.msra.mxu0 0.0
        %1951 = vmatprep.subr.mxu0 0.0
        %1952 = vmatpush1.msra.mxu0 0.0
        %1953 = vmatprep.subr.mxu0 0.0
        %1954 = vmatpush1.msra.mxu0 0.0
        %1955 = vmatprep.subr.mxu0 0.0
        %1956 = vmatpush1.msra.mxu0 0.0
        %1957 = vmatprep.subr.mxu0 0.0
        %1958 = vmatpush1.msra.mxu0 0.0
        %1959 = vmatprep.subr.mxu0 0.0
        %1960 = vmatpush1.msra.mxu0 0.0
        %1961 = vmatprep.subr.mxu0 0.0
        %1962 = vmatpush1.msra.mxu0 0.0
        %1963 = vmatprep.subr.mxu0 0.0
        %1964 = vmatpush1.msra.mxu0 0.0
        %1965 = vmatprep.subr.mxu0 0.0
        %1966 = vmatpush1.msra.mxu0 0.0
        %1967 = vmatprep.subr.mxu0 0.0
        %1968 = vmatpush1.msra.mxu0 0.0
        %1969 = vmatprep.mubr.f32.mxu0 0.0
        %1970 = vmatmul.mubr.f32.gmra.mrb[0].mxu0 %v1901
        %v1971 = vpop.f32.mrb[0].mxu0
        %v1972 = vadd.f32 0.0, %v1971
        %v1973 = vpop.f32.mrb[0].mxu0
        %v1974 = vadd.f32 0.0, %v1973
        %1975 = vdwg.mxu0
        %1976 = vmatprep.subr.mxu0 %v557
        %1977 = vmatpush1.msra.mxu0 %v556
        %1978 = vmatprep.subr.mxu0 %v587
        %1979 = vmatpush1.msra.mxu0 %v585
        %1980 = vmatprep.subr.mxu0 0.0
        %1981 = vmatpush1.msra.mxu0 0.0
        %1982 = vmatprep.subr.mxu0 0.0
        %1983 = vmatpush1.msra.mxu0 0.0
        %1984 = vmatprep.subr.mxu0 0.0
        %1985 = vmatpush1.msra.mxu0 0.0
        %1986 = vmatprep.subr.mxu0 0.0
        %1987 = vmatpush1.msra.mxu0 0.0
        %1988 = vmatprep.subr.mxu0 0.0
        %1989 = vmatpush1.msra.mxu0 0.0
        %1990 = vmatprep.subr.mxu0 0.0
        %1991 = vmatpush1.msra.mxu0 0.0
        %1992 = vmatprep.subr.mxu0 0.0
        %1993 = vmatpush1.msra.mxu0 0.0
        %1994 = vmatprep.subr.mxu0 0.0
        %1995 = vmatpush1.msra.mxu0 0.0
        %1996 = vmatprep.subr.mxu0 0.0
        %1997 = vmatpush1.msra.mxu0 0.0
        %1998 = vmatprep.subr.mxu0 0.0
        %1999 = vmatpush1.msra.mxu0 0.0
        %2000 = vmatprep.subr.mxu0 0.0
        %2001 = vmatpush1.msra.mxu0 0.0
        %2002 = vmatprep.subr.mxu0 0.0
        %2003 = vmatpush1.msra.mxu0 0.0
        %2004 = vmatprep.subr.mxu0 0.0
        %2005 = vmatpush1.msra.mxu0 0.0
        %2006 = vmatprep.subr.mxu0 0.0
        %2007 = vmatpush1.msra.mxu0 0.0
        %2008 = vmatprep.subr.mxu0 0.0
        %2009 = vmatpush1.msra.mxu0 0.0
        %2010 = vmatprep.subr.mxu0 0.0
        %2011 = vmatpush1.msra.mxu0 0.0
        %2012 = vmatprep.subr.mxu0 0.0
        %2013 = vmatpush1.msra.mxu0 0.0
        %2014 = vmatprep.subr.mxu0 0.0
        %2015 = vmatpush1.msra.mxu0 0.0
        %2016 = vmatprep.subr.mxu0 0.0
        %2017 = vmatpush1.msra.mxu0 0.0
        %2018 = vmatprep.subr.mxu0 0.0
        %2019 = vmatpush1.msra.mxu0 0.0
        %2020 = vmatprep.subr.mxu0 0.0
        %2021 = vmatpush1.msra.mxu0 0.0
        %2022 = vmatprep.subr.mxu0 0.0
        %2023 = vmatpush1.msra.mxu0 0.0
        %2024 = vmatprep.subr.mxu0 0.0
        %2025 = vmatpush1.msra.mxu0 0.0
        %2026 = vmatprep.subr.mxu0 0.0
        %2027 = vmatpush1.msra.mxu0 0.0
        %2028 = vmatprep.subr.mxu0 0.0
        %2029 = vmatpush1.msra.mxu0 0.0
        %2030 = vmatprep.subr.mxu0 0.0
        %2031 = vmatpush1.msra.mxu0 0.0
        %2032 = vmatprep.subr.mxu0 0.0
        %2033 = vmatpush1.msra.mxu0 0.0
        %2034 = vmatprep.subr.mxu0 0.0
        %2035 = vmatpush1.msra.mxu0 0.0
        %2036 = vmatprep.subr.mxu0 0.0
        %2037 = vmatpush1.msra.mxu0 0.0
        %2038 = vmatprep.subr.mxu0 0.0
        %2039 = vmatpush1.msra.mxu0 0.0
        %2040 = vmatprep.mubr.f32.mxu0 0.0
        %2041 = vmatmul.mubr.f32.gmra.mrb[0].mxu0 %v1901
        %v2042 = vpop.f32.mrb[0].mxu0
        %v2043 = vadd.f32 0.0, %v2042
        %v2044 = vpop.f32.mrb[0].mxu0
        %v2045 = vadd.f32 0.0, %v2044
        %2046 = vdwg.mxu0
        %2047 = vmatprep.subr.mxu0 %v559
        %2048 = vmatpush1.msra.mxu0 %v558
        %2049 = vmatprep.subr.mxu0 %v591
        %2050 = vmatpush1.msra.mxu0 %v589
        %2051 = vmatprep.subr.mxu0 0.0
        %2052 = vmatpush1.msra.mxu0 0.0
        %2053 = vmatprep.subr.mxu0 0.0
        %2054 = vmatpush1.msra.mxu0 0.0
        %2055 = vmatprep.subr.mxu0 0.0
        %2056 = vmatpush1.msra.mxu0 0.0
        %2057 = vmatprep.subr.mxu0 0.0
        %2058 = vmatpush1.msra.mxu0 0.0
        %2059 = vmatprep.subr.mxu0 0.0
        %2060 = vmatpush1.msra.mxu0 0.0
        %2061 = vmatprep.subr.mxu0 0.0
        %2062 = vmatpush1.msra.mxu0 0.0
        %2063 = vmatprep.subr.mxu0 0.0
        %2064 = vmatpush1.msra.mxu0 0.0
        %2065 = vmatprep.subr.mxu0 0.0
        %2066 = vmatpush1.msra.mxu0 0.0
        %2067 = vmatprep.subr.mxu0 0.0
        %2068 = vmatpush1.msra.mxu0 0.0
        %2069 = vmatprep.subr.mxu0 0.0
        %2070 = vmatpush1.msra.mxu0 0.0
        %2071 = vmatprep.subr.mxu0 0.0
        %2072 = vmatpush1.msra.mxu0 0.0
        %2073 = vmatprep.subr.mxu0 0.0
        %2074 = vmatpush1.msra.mxu0 0.0
        %2075 = vmatprep.subr.mxu0 0.0
        %2076 = vmatpush1.msra.mxu0 0.0
        %2077 = vmatprep.subr.mxu0 0.0
        %2078 = vmatpush1.msra.mxu0 0.0
        %2079 = vmatprep.subr.mxu0 0.0
        %2080 = vmatpush1.msra.mxu0 0.0
        %2081 = vmatprep.subr.mxu0 0.0
        %2082 = vmatpush1.msra.mxu0 0.0
        %2083 = vmatprep.subr.mxu0 0.0
        %2084 = vmatpush1.msra.mxu0 0.0
        %2085 = vmatprep.subr.mxu0 0.0
        %2086 = vmatpush1.msra.mxu0 0.0
        %2087 = vmatprep.subr.mxu0 0.0
        %2088 = vmatpush1.msra.mxu0 0.0
        %2089 = vmatprep.subr.mxu0 0.0
        %2090 = vmatpush1.msra.mxu0 0.0
        %2091 = vmatprep.subr.mxu0 0.0
        %2092 = vmatpush1.msra.mxu0 0.0
        %2093 = vmatprep.subr.mxu0 0.0
        %2094 = vmatpush1.msra.mxu0 0.0
        %2095 = vmatprep.subr.mxu0 0.0
        %2096 = vmatpush1.msra.mxu0 0.0
        %2097 = vmatprep.subr.mxu0 0.0
        %2098 = vmatpush1.msra.mxu0 0.0
        %2099 = vmatprep.subr.mxu0 0.0
        %2100 = vmatpush1.msra.mxu0 0.0
        %2101 = vmatprep.subr.mxu0 0.0
        %2102 = vmatpush1.msra.mxu0 0.0
        %2103 = vmatprep.subr.mxu0 0.0
        %2104 = vmatpush1.msra.mxu0 0.0
        %2105 = vmatprep.subr.mxu0 0.0
        %2106 = vmatpush1.msra.mxu0 0.0
        %2107 = vmatprep.subr.mxu0 0.0
        %2108 = vmatpush1.msra.mxu0 0.0
        %2109 = vmatprep.subr.mxu0 0.0
        %2110 = vmatpush1.msra.mxu0 0.0
        %2111 = vmatprep.mubr.f32.mxu0 0.0
        %2112 = vmatmul.mubr.f32.gmra.mrb[0].mxu0 %v1901
        %v2113 = vpop.f32.mrb[0].mxu0
        %v2114 = vadd.f32 0.0, %v2113
        %v2115 = vpop.f32.mrb[0].mxu0
        %v2116 = vadd.f32 0.0, %v2115
        %2117 = vdwg.mxu0
        %2118 = vmatprep.subr.mxu0 %v561
        %2119 = vmatpush1.msra.mxu0 %v560
        %2120 = vmatprep.subr.mxu0 %v595
        %2121 = vmatpush1.msra.mxu0 %v593
        %2122 = vmatprep.subr.mxu0 0.0
        %2123 = vmatpush1.msra.mxu0 0.0
        %2124 = vmatprep.subr.mxu0 0.0
        %2125 = vmatpush1.msra.mxu0 0.0
        %2126 = vmatprep.subr.mxu0 0.0
        %2127 = vmatpush1.msra.mxu0 0.0
        %2128 = vmatprep.subr.mxu0 0.0
        %2129 = vmatpush1.msra.mxu0 0.0
        %2130 = vmatprep.subr.mxu0 0.0
        %2131 = vmatpush1.msra.mxu0 0.0
        %2132 = vmatprep.subr.mxu0 0.0
        %2133 = vmatpush1.msra.mxu0 0.0
        %2134 = vmatprep.subr.mxu0 0.0
        %2135 = vmatpush1.msra.mxu0 0.0
        %2136 = vmatprep.subr.mxu0 0.0
        %2137 = vmatpush1.msra.mxu0 0.0
        %2138 = vmatprep.subr.mxu0 0.0
        %2139 = vmatpush1.msra.mxu0 0.0
        %2140 = vmatprep.subr.mxu0 0.0
        %2141 = vmatpush1.msra.mxu0 0.0
        %2142 = vmatprep.subr.mxu0 0.0
        %2143 = vmatpush1.msra.mxu0 0.0
        %2144 = vmatprep.subr.mxu0 0.0
        %2145 = vmatpush1.msra.mxu0 0.0
        %2146 = vmatprep.subr.mxu0 0.0
        %2147 = vmatpush1.msra.mxu0 0.0
        %2148 = vmatprep.subr.mxu0 0.0
        %2149 = vmatpush1.msra.mxu0 0.0
        %2150 = vmatprep.subr.mxu0 0.0
        %2151 = vmatpush1.msra.mxu0 0.0
        %2152 = vmatprep.subr.mxu0 0.0
        %2153 = vmatpush1.msra.mxu0 0.0
        %2154 = vmatprep.subr.mxu0 0.0
        %2155 = vmatpush1.msra.mxu0 0.0
        %2156 = vmatprep.subr.mxu0 0.0
        %2157 = vmatpush1.msra.mxu0 0.0
        %2158 = vmatprep.subr.mxu0 0.0
        %2159 = vmatpush1.msra.mxu0 0.0
        %2160 = vmatprep.subr.mxu0 0.0
        %2161 = vmatpush1.msra.mxu0 0.0
        %2162 = vmatprep.subr.mxu0 0.0
        %2163 = vmatpush1.msra.mxu0 0.0
        %2164 = vmatprep.subr.mxu0 0.0
        %2165 = vmatpush1.msra.mxu0 0.0
        %2166 = vmatprep.subr.mxu0 0.0
        %2167 = vmatpush1.msra.mxu0 0.0
        %2168 = vmatprep.subr.mxu0 0.0
        %2169 = vmatpush1.msra.mxu0 0.0
        %2170 = vmatprep.subr.mxu0 0.0
        %2171 = vmatpush1.msra.mxu0 0.0
        %2172 = vmatprep.subr.mxu0 0.0
        %2173 = vmatpush1.msra.mxu0 0.0
        %2174 = vmatprep.subr.mxu0 0.0
        %2175 = vmatpush1.msra.mxu0 0.0
        %2176 = vmatprep.subr.mxu0 0.0
        %2177 = vmatpush1.msra.mxu0 0.0
        %2178 = vmatprep.subr.mxu0 0.0
        %2179 = vmatpush1.msra.mxu0 0.0
        %2180 = vmatprep.subr.mxu0 0.0
        %2181 = vmatpush1.msra.mxu0 0.0
        %2182 = vmatprep.mubr.f32.mxu0 0.0
        %2183 = vmatmul.mubr.f32.gmra.mrb[0].mxu0 %v1901
        %v2184 = vpop.f32.mrb[0].mxu0
        %v2185 = vadd.f32 0.0, %v2184
        %v2186 = vpop.f32.mrb[0].mxu0
        %v2187 = vadd.f32 0.0, %v2186
        %2188 = vdwg.mxu0
        %2189 = vmatprep.subr.mxu0 %v563
        %2190 = vmatpush1.msra.mxu0 %v562
        %2191 = vmatprep.subr.mxu0 %v599
        %2192 = vmatpush1.msra.mxu0 %v597
        %2193 = vmatprep.subr.mxu0 0.0
        %2194 = vmatpush1.msra.mxu0 0.0
        %2195 = vmatprep.subr.mxu0 0.0
        %2196 = vmatpush1.msra.mxu0 0.0
        %2197 = vmatprep.subr.mxu0 0.0
        %2198 = vmatpush1.msra.mxu0 0.0
        %2199 = vmatprep.subr.mxu0 0.0
        %2200 = vmatpush1.msra.mxu0 0.0
        %2201 = vmatprep.subr.mxu0 0.0
        %2202 = vmatpush1.msra.mxu0 0.0
        %2203 = vmatprep.subr.mxu0 0.0
        %2204 = vmatpush1.msra.mxu0 0.0
        %2205 = vmatprep.subr.mxu0 0.0
        %2206 = vmatpush1.msra.mxu0 0.0
        %2207 = vmatprep.subr.mxu0 0.0
        %2208 = vmatpush1.msra.mxu0 0.0
        %2209 = vmatprep.subr.mxu0 0.0
        %2210 = vmatpush1.msra.mxu0 0.0
        %2211 = vmatprep.subr.mxu0 0.0
        %2212 = vmatpush1.msra.mxu0 0.0
        %2213 = vmatprep.subr.mxu0 0.0
        %2214 = vmatpush1.msra.mxu0 0.0
        %2215 = vmatprep.subr.mxu0 0.0
        %2216 = vmatpush1.msra.mxu0 0.0
        %2217 = vmatprep.subr.mxu0 0.0
        %2218 = vmatpush1.msra.mxu0 0.0
        %2219 = vmatprep.subr.mxu0 0.0
        %2220 = vmatpush1.msra.mxu0 0.0
        %2221 = vmatprep.subr.mxu0 0.0
        %2222 = vmatpush1.msra.mxu0 0.0
        %2223 = vmatprep.subr.mxu0 0.0
        %2224 = vmatpush1.msra.mxu0 0.0
        %2225 = vmatprep.subr.mxu0 0.0
        %2226 = vmatpush1.msra.mxu0 0.0
        %2227 = vmatprep.subr.mxu0 0.0
        %2228 = vmatpush1.msra.mxu0 0.0
        %2229 = vmatprep.subr.mxu0 0.0
        %2230 = vmatpush1.msra.mxu0 0.0
        %2231 = vmatprep.subr.mxu0 0.0
        %2232 = vmatpush1.msra.mxu0 0.0
        %2233 = vmatprep.subr.mxu0 0.0
        %2234 = vmatpush1.msra.mxu0 0.0
        %2235 = vmatprep.subr.mxu0 0.0
        %2236 = vmatpush1.msra.mxu0 0.0
        %2237 = vmatprep.subr.mxu0 0.0
        %2238 = vmatpush1.msra.mxu0 0.0
        %2239 = vmatprep.subr.mxu0 0.0
        %2240 = vmatpush1.msra.mxu0 0.0
        %2241 = vmatprep.subr.mxu0 0.0
        %2242 = vmatpush1.msra.mxu0 0.0
        %2243 = vmatprep.subr.mxu0 0.0
        %2244 = vmatpush1.msra.mxu0 0.0
        %2245 = vmatprep.subr.mxu0 0.0
        %2246 = vmatpush1.msra.mxu0 0.0
        %2247 = vmatprep.subr.mxu0 0.0
        %2248 = vmatpush1.msra.mxu0 0.0
        %2249 = vmatprep.subr.mxu0 0.0
        %2250 = vmatpush1.msra.mxu0 0.0
        %2251 = vmatprep.subr.mxu0 0.0
        %2252 = vmatpush1.msra.mxu0 0.0
        %2253 = vmatprep.mubr.f32.mxu0 0.0
        %2254 = vmatmul.mubr.f32.gmra.mrb[0].mxu0 %v1901
        %v2255 = vpop.f32.mrb[0].mxu0
        %v2256 = vadd.f32 0.0, %v2255
        %v2257 = vpop.f32.mrb[0].mxu0
        %v2258 = vadd.f32 0.0, %v2257
        %2259 = vdwg.mxu0
        %2260 = vmatprep.subr.mxu0 %v565
        %2261 = vmatpush1.msra.mxu0 %v564
        %2262 = vmatprep.subr.mxu0 %v603
        %2263 = vmatpush1.msra.mxu0 %v601
        %2264 = vmatprep.subr.mxu0 0.0
        %2265 = vmatpush1.msra.mxu0 0.0
        %2266 = vmatprep.subr.mxu0 0.0
        %2267 = vmatpush1.msra.mxu0 0.0
        %2268 = vmatprep.subr.mxu0 0.0
        %2269 = vmatpush1.msra.mxu0 0.0
        %2270 = vmatprep.subr.mxu0 0.0
        %2271 = vmatpush1.msra.mxu0 0.0
        %2272 = vmatprep.subr.mxu0 0.0
        %2273 = vmatpush1.msra.mxu0 0.0
        %2274 = vmatprep.subr.mxu0 0.0
        %2275 = vmatpush1.msra.mxu0 0.0
        %2276 = vmatprep.subr.mxu0 0.0
        %2277 = vmatpush1.msra.mxu0 0.0
        %2278 = vmatprep.subr.mxu0 0.0
        %2279 = vmatpush1.msra.mxu0 0.0
        %2280 = vmatprep.subr.mxu0 0.0
        %2281 = vmatpush1.msra.mxu0 0.0
        %2282 = vmatprep.subr.mxu0 0.0
        %2283 = vmatpush1.msra.mxu0 0.0
        %2284 = vmatprep.subr.mxu0 0.0
        %2285 = vmatpush1.msra.mxu0 0.0
        %2286 = vmatprep.subr.mxu0 0.0
        %2287 = vmatpush1.msra.mxu0 0.0
        %2288 = vmatprep.subr.mxu0 0.0
        %2289 = vmatpush1.msra.mxu0 0.0
        %2290 = vmatprep.subr.mxu0 0.0
        %2291 = vmatpush1.msra.mxu0 0.0
        %2292 = vmatprep.subr.mxu0 0.0
        %2293 = vmatpush1.msra.mxu0 0.0
        %2294 = vmatprep.subr.mxu0 0.0
        %2295 = vmatpush1.msra.mxu0 0.0
        %2296 = vmatprep.subr.mxu0 0.0
        %2297 = vmatpush1.msra.mxu0 0.0
        %2298 = vmatprep.subr.mxu0 0.0
        %2299 = vmatpush1.msra.mxu0 0.0
        %2300 = vmatprep.subr.mxu0 0.0
        %2301 = vmatpush1.msra.mxu0 0.0
        %2302 = vmatprep.subr.mxu0 0.0
        %2303 = vmatpush1.msra.mxu0 0.0
        %2304 = vmatprep.subr.mxu0 0.0
        %2305 = vmatpush1.msra.mxu0 0.0
        %2306 = vmatprep.subr.mxu0 0.0
        %2307 = vmatpush1.msra.mxu0 0.0
        %2308 = vmatprep.subr.mxu0 0.0
        %2309 = vmatpush1.msra.mxu0 0.0
        %2310 = vmatprep.subr.mxu0 0.0
        %2311 = vmatpush1.msra.mxu0 0.0
        %2312 = vmatprep.subr.mxu0 0.0
        %2313 = vmatpush1.msra.mxu0 0.0
        %2314 = vmatprep.subr.mxu0 0.0
        %2315 = vmatpush1.msra.mxu0 0.0
        %2316 = vmatprep.subr.mxu0 0.0
        %2317 = vmatpush1.msra.mxu0 0.0
        %2318 = vmatprep.subr.mxu0 0.0
        %2319 = vmatpush1.msra.mxu0 0.0
        %2320 = vmatprep.subr.mxu0 0.0
        %2321 = vmatpush1.msra.mxu0 0.0
        %2322 = vmatprep.subr.mxu0 0.0
        %2323 = vmatpush1.msra.mxu0 0.0
        %2324 = vmatprep.mubr.f32.mxu0 0.0
        %2325 = vmatmul.mubr.f32.gmra.mrb[0].mxu0 %v1901
        %v2326 = vpop.f32.mrb[0].mxu0
        %v2327 = vadd.f32 0.0, %v2326
        %v2328 = vpop.f32.mrb[0].mxu0
        %v2329 = vadd.f32 0.0, %v2328
        %2330 = vdwg.mxu0
        %2331 = vmatprep.subr.mxu0 %v567
        %2332 = vmatpush1.msra.mxu0 %v566
        %2333 = vmatprep.subr.mxu0 %v607
        %2334 = vmatpush1.msra.mxu0 %v605
        %2335 = vmatprep.subr.mxu0 0.0
        %2336 = vmatpush1.msra.mxu0 0.0
        %2337 = vmatprep.subr.mxu0 0.0
        %2338 = vmatpush1.msra.mxu0 0.0
        %2339 = vmatprep.subr.mxu0 0.0
        %2340 = vmatpush1.msra.mxu0 0.0
        %2341 = vmatprep.subr.mxu0 0.0
        %2342 = vmatpush1.msra.mxu0 0.0
        %2343 = vmatprep.subr.mxu0 0.0
        %2344 = vmatpush1.msra.mxu0 0.0
        %2345 = vmatprep.subr.mxu0 0.0
        %2346 = vmatpush1.msra.mxu0 0.0
        %2347 = vmatprep.subr.mxu0 0.0
        %2348 = vmatpush1.msra.mxu0 0.0
        %2349 = vmatprep.subr.mxu0 0.0
        %2350 = vmatpush1.msra.mxu0 0.0
        %2351 = vmatprep.subr.mxu0 0.0
        %2352 = vmatpush1.msra.mxu0 0.0
        %2353 = vmatprep.subr.mxu0 0.0
        %2354 = vmatpush1.msra.mxu0 0.0
        %2355 = vmatprep.subr.mxu0 0.0
        %2356 = vmatpush1.msra.mxu0 0.0
        %2357 = vmatprep.subr.mxu0 0.0
        %2358 = vmatpush1.msra.mxu0 0.0
        %2359 = vmatprep.subr.mxu0 0.0
        %2360 = vmatpush1.msra.mxu0 0.0
        %2361 = vmatprep.subr.mxu0 0.0
        %2362 = vmatpush1.msra.mxu0 0.0
        %2363 = vmatprep.subr.mxu0 0.0
        %2364 = vmatpush1.msra.mxu0 0.0
        %2365 = vmatprep.subr.mxu0 0.0
        %2366 = vmatpush1.msra.mxu0 0.0
        %2367 = vmatprep.subr.mxu0 0.0
        %2368 = vmatpush1.msra.mxu0 0.0
        %2369 = vmatprep.subr.mxu0 0.0
        %2370 = vmatpush1.msra.mxu0 0.0
        %2371 = vmatprep.subr.mxu0 0.0
        %2372 = vmatpush1.msra.mxu0 0.0
        %2373 = vmatprep.subr.mxu0 0.0
        %2374 = vmatpush1.msra.mxu0 0.0
        %2375 = vmatprep.subr.mxu0 0.0
        %2376 = vmatpush1.msra.mxu0 0.0
        %2377 = vmatprep.subr.mxu0 0.0
        %2378 = vmatpush1.msra.mxu0 0.0
        %2379 = vmatprep.subr.mxu0 0.0
        %2380 = vmatpush1.msra.mxu0 0.0
        %2381 = vmatprep.subr.mxu0 0.0
        %2382 = vmatpush1.msra.mxu0 0.0
        %2383 = vmatprep.subr.mxu0 0.0
        %2384 = vmatpush1.msra.mxu0 0.0
        %2385 = vmatprep.subr.mxu0 0.0
        %2386 = vmatpush1.msra.mxu0 0.0
        %2387 = vmatprep.subr.mxu0 0.0
        %2388 = vmatpush1.msra.mxu0 0.0
        %2389 = vmatprep.subr.mxu0 0.0
        %2390 = vmatpush1.msra.mxu0 0.0
        %2391 = vmatprep.subr.mxu0 0.0
        %2392 = vmatpush1.msra.mxu0 0.0
        %2393 = vmatprep.subr.mxu0 0.0
        %2394 = vmatpush1.msra.mxu0 0.0
        %2395 = vmatprep.mubr.f32.mxu0 0.0
        %2396 = vmatmul.mubr.f32.gmra.mrb[0].mxu0 %v1901
        %v2397 = vpop.f32.mrb[0].mxu0
        %v2398 = vadd.f32 0.0, %v2397
        %v2399 = vpop.f32.mrb[0].mxu0
        %v2400 = vadd.f32 0.0, %v2399
        %2401 = vdwg.mxu0
        %2402 = vmatprep.subr.mxu0 %v569
        %2403 = vmatpush1.msra.mxu0 %v568
        %2404 = vmatprep.subr.mxu0 %v611
        %2405 = vmatpush1.msra.mxu0 %v609
        %2406 = vmatprep.subr.mxu0 0.0
        %2407 = vmatpush1.msra.mxu0 0.0
        %2408 = vmatprep.subr.mxu0 0.0
        %2409 = vmatpush1.msra.mxu0 0.0
        %2410 = vmatprep.subr.mxu0 0.0
        %2411 = vmatpush1.msra.mxu0 0.0
        %2412 = vmatprep.subr.mxu0 0.0
        %2413 = vmatpush1.msra.mxu0 0.0
        %2414 = vmatprep.subr.mxu0 0.0
        %2415 = vmatpush1.msra.mxu0 0.0
        %2416 = vmatprep.subr.mxu0 0.0
        %2417 = vmatpush1.msra.mxu0 0.0
        %2418 = vmatprep.subr.mxu0 0.0
        %2419 = vmatpush1.msra.mxu0 0.0
        %2420 = vmatprep.subr.mxu0 0.0
        %2421 = vmatpush1.msra.mxu0 0.0
        %2422 = vmatprep.subr.mxu0 0.0
        %2423 = vmatpush1.msra.mxu0 0.0
        %2424 = vmatprep.subr.mxu0 0.0
        %2425 = vmatpush1.msra.mxu0 0.0
        %2426 = vmatprep.subr.mxu0 0.0
        %2427 = vmatpush1.msra.mxu0 0.0
        %2428 = vmatprep.subr.mxu0 0.0
        %2429 = vmatpush1.msra.mxu0 0.0
        %2430 = vmatprep.subr.mxu0 0.0
        %2431 = vmatpush1.msra.mxu0 0.0
        %2432 = vmatprep.subr.mxu0 0.0
        %2433 = vmatpush1.msra.mxu0 0.0
        %2434 = vmatprep.subr.mxu0 0.0
        %2435 = vmatpush1.msra.mxu0 0.0
        %2436 = vmatprep.subr.mxu0 0.0
        %2437 = vmatpush1.msra.mxu0 0.0
        %2438 = vmatprep.subr.mxu0 0.0
        %2439 = vmatpush1.msra.mxu0 0.0
        %2440 = vmatprep.subr.mxu0 0.0
        %2441 = vmatpush1.msra.mxu0 0.0
        %2442 = vmatprep.subr.mxu0 0.0
        %2443 = vmatpush1.msra.mxu0 0.0
        %2444 = vmatprep.subr.mxu0 0.0
        %2445 = vmatpush1.msra.mxu0 0.0
        %2446 = vmatprep.subr.mxu0 0.0
        %2447 = vmatpush1.msra.mxu0 0.0
        %2448 = vmatprep.subr.mxu0 0.0
        %2449 = vmatpush1.msra.mxu0 0.0
        %2450 = vmatprep.subr.mxu0 0.0
        %2451 = vmatpush1.msra.mxu0 0.0
        %2452 = vmatprep.subr.mxu0 0.0
        %2453 = vmatpush1.msra.mxu0 0.0
        %2454 = vmatprep.subr.mxu0 0.0
        %2455 = vmatpush1.msra.mxu0 0.0
        %2456 = vmatprep.subr.mxu0 0.0
        %2457 = vmatpush1.msra.mxu0 0.0
        %2458 = vmatprep.subr.mxu0 0.0
        %2459 = vmatpush1.msra.mxu0 0.0
        %2460 = vmatprep.subr.mxu0 0.0
        %2461 = vmatpush1.msra.mxu0 0.0
        %2462 = vmatprep.subr.mxu0 0.0
        %2463 = vmatpush1.msra.mxu0 0.0
        %2464 = vmatprep.subr.mxu0 0.0
        %2465 = vmatpush1.msra.mxu0 0.0
        %2466 = vmatprep.mubr.f32.mxu0 0.0
        %2467 = vmatmul.mubr.f32.gmra.mrb[0].mxu0 %v1901
        %v2468 = vpop.f32.mrb[0].mxu0
        %v2469 = vadd.f32 0.0, %v2468
        %v2470 = vpop.f32.mrb[0].mxu0
        %v2471 = vadd.f32 0.0, %v2470
        %2472 = vdwg.mxu0
        %2473 = vmatprep.subr.mxu0 %v571
        %2474 = vmatpush1.msra.mxu0 %v570
        %2475 = vmatprep.subr.mxu0 %v1903
        %2476 = vmatpush1.msra.mxu0 %v613
        %2477 = vmatprep.subr.mxu0 0.0
        %2478 = vmatpush1.msra.mxu0 0.0
        %2479 = vmatprep.subr.mxu0 0.0
        %2480 = vmatpush1.msra.mxu0 0.0
        %2481 = vmatprep.subr.mxu0 0.0
        %2482 = vmatpush1.msra.mxu0 0.0
        %2483 = vmatprep.subr.mxu0 0.0
        %2484 = vmatpush1.msra.mxu0 0.0
        %2485 = vmatprep.subr.mxu0 0.0
        %2486 = vmatpush1.msra.mxu0 0.0
        %2487 = vmatprep.subr.mxu0 0.0
        %2488 = vmatpush1.msra.mxu0 0.0
        %2489 = vmatprep.subr.mxu0 0.0
        %2490 = vmatpush1.msra.mxu0 0.0
        %2491 = vmatprep.subr.mxu0 0.0
        %2492 = vmatpush1.msra.mxu0 0.0
        %2493 = vmatprep.subr.mxu0 0.0
        %2494 = vmatpush1.msra.mxu0 0.0
        %2495 = vmatprep.subr.mxu0 0.0
        %2496 = vmatpush1.msra.mxu0 0.0
        %2497 = vmatprep.subr.mxu0 0.0
        %2498 = vmatpush1.msra.mxu0 0.0
        %2499 = vmatprep.subr.mxu0 0.0
        %2500 = vmatpush1.msra.mxu0 0.0
        %2501 = vmatprep.subr.mxu0 0.0
        %2502 = vmatpush1.msra.mxu0 0.0
        %2503 = vmatprep.subr.mxu0 0.0
        %2504 = vmatpush1.msra.mxu0 0.0
        %2505 = vmatprep.subr.mxu0 0.0
        %2506 = vmatpush1.msra.mxu0 0.0
        %2507 = vmatprep.subr.mxu0 0.0
        %2508 = vmatpush1.msra.mxu0 0.0
        %2509 = vmatprep.subr.mxu0 0.0
        %2510 = vmatpush1.msra.mxu0 0.0
        %2511 = vmatprep.subr.mxu0 0.0
        %2512 = vmatpush1.msra.mxu0 0.0
        %2513 = vmatprep.subr.mxu0 0.0
        %2514 = vmatpush1.msra.mxu0 0.0
        %2515 = vmatprep.subr.mxu0 0.0
        %2516 = vmatpush1.msra.mxu0 0.0
        %2517 = vmatprep.subr.mxu0 0.0
        %2518 = vmatpush1.msra.mxu0 0.0
        %2519 = vmatprep.subr.mxu0 0.0
        %2520 = vmatpush1.msra.mxu0 0.0
        %2521 = vmatprep.subr.mxu0 0.0
        %2522 = vmatpush1.msra.mxu0 0.0
        %2523 = vmatprep.subr.mxu0 0.0
        %2524 = vmatpush1.msra.mxu0 0.0
        %2525 = vmatprep.subr.mxu0 0.0
        %2526 = vmatpush1.msra.mxu0 0.0
        %2527 = vmatprep.subr.mxu0 0.0
        %2528 = vmatpush1.msra.mxu0 0.0
        %2529 = vmatprep.subr.mxu0 0.0
        %2530 = vmatpush1.msra.mxu0 0.0
        %2531 = vmatprep.subr.mxu0 0.0
        %2532 = vmatpush1.msra.mxu0 0.0
        %2533 = vmatprep.subr.mxu0 0.0
        %2534 = vmatpush1.msra.mxu0 0.0
        %2535 = vmatprep.subr.mxu0 0.0
        %2536 = vmatpush1.msra.mxu0 0.0
        %2537 = vmatprep.mubr.f32.mxu0 0.0
        %2538 = vmatmul.mubr.f32.gmra.mrb[0].mxu0 %v1901
        %v2539 = vpop.f32.mrb[0].mxu0
        %v2540 = vadd.f32 0.0, %v2539
        %v2541 = vpop.f32.mrb[0].mxu0
        %v2542 = vadd.f32 0.0, %v2541
        %2543 = vdwg.mxu0
        %v2544 = vadd.f32 %v1326, %v1972
        %v2545 = vadd.f32 %v1328, %v1974
        %v2546 = vadd.f32 %v1397, %v2043
        %v2547 = vadd.f32 %v1399, %v2045
        %v2548 = vadd.f32 %v1468, %v2114
        %v2549 = vadd.f32 %v1470, %v2116
        %v2550 = vadd.f32 %v1539, %v2185
        %v2551 = vadd.f32 %v1541, %v2187
        %v2552 = vadd.f32 %v1610, %v2256
        %v2553 = vadd.f32 %v1612, %v2258
        %v2554 = vadd.f32 %v1681, %v2327
        %v2555 = vadd.f32 %v1683, %v2329
        %v2556 = vadd.f32 %v1752, %v2398
        %v2557 = vadd.f32 %v1754, %v2400
        %v2558 = vadd.f32 %v1823, %v2469
        %v2559 = vadd.f32 %v1825, %v2471
        %v2560 = vadd.f32 %v1894, %v2540
        %v2561 = vadd.f32 %v1896, %v2542
        %v2562 = vld [vmem:[%s340] sm:$0xff]
        %2564 = vset.pattern.permute.xlu0 0
        %2565 = vperm.xlu0 %2564, %v2562
        %v2566 = vpop.permute.xlu0 %2565
        %v2568 = vadd.f32 %v2544, %v2566
        %v2569 = vadd.f32 %v2545, %v2566
        %v2570 = vadd.f32 %v2546, %v2566
        %v2571 = vadd.f32 %v2547, %v2566
        %v2572 = vadd.f32 %v2548, %v2566
        %v2573 = vadd.f32 %v2549, %v2566
        %v2574 = vadd.f32 %v2550, %v2566
        %v2575 = vadd.f32 %v2551, %v2566
        %v2576 = vadd.f32 %v2552, %v2566
        %v2577 = vadd.f32 %v2553, %v2566
        %v2578 = vadd.f32 %v2554, %v2566
        %v2579 = vadd.f32 %v2555, %v2566
        %v2580 = vadd.f32 %v2556, %v2566
        %v2581 = vadd.f32 %v2557, %v2566
        %v2582 = vadd.f32 %v2558, %v2566
        %v2583 = vadd.f32 %v2559, %v2566
        %v2584 = vadd.f32 %v2560, %v2566
        %v2585 = vadd.f32 %v2561, %v2566
        %v2586 = vmax.f32 %v2568, 0.0
        %v2587 = vmax.f32 %v2569, 0.0
        %v2588 = vmax.f32 %v2570, 0.0
        %v2589 = vmax.f32 %v2571, 0.0
        %v2590 = vmax.f32 %v2572, 0.0
        %v2591 = vmax.f32 %v2573, 0.0
        %v2592 = vmax.f32 %v2574, 0.0
        %v2593 = vmax.f32 %v2575, 0.0
        %v2594 = vmax.f32 %v2576, 0.0
        %v2595 = vmax.f32 %v2577, 0.0
        %v2596 = vmax.f32 %v2578, 0.0
        %v2597 = vmax.f32 %v2579, 0.0
        %v2598 = vmax.f32 %v2580, 0.0
        %v2599 = vmax.f32 %v2581, 0.0
        %v2600 = vmax.f32 %v2582, 0.0
        %v2601 = vmax.f32 %v2583, 0.0
        %v2602 = vmax.f32 %v2584, 0.0
        %v2603 = vmax.f32 %v2585, 0.0
        %2604 = vst [vmem:[%s328] sm:$0xff] %v2586
        %2605 = vst [vmem:[%s328 + $0x8] sm:$0xff] %v2587
        %2606 = vst [vmem:[%s328 + $0x10] sm:$0xff] %v2588
        %2607 = vst [vmem:[%s328 + $0x18] sm:$0xff] %v2589
        %2608 = vst [vmem:[%s328 + $0x20] sm:$0xff] %v2590
        %2609 = vst [vmem:[%s328 + $0x28] sm:$0xff] %v2591
        %2610 = vst [vmem:[%s328 + $0x30] sm:$0xff] %v2592
        %2611 = vst [vmem:[%s328 + $0x38] sm:$0xff] %v2593
        %2612 = vst [vmem:[%s328 + $0x40] sm:$0xff] %v2594
        %2613 = vst [vmem:[%s328 + $0x48] sm:$0xff] %v2595
        %2614 = vst [vmem:[%s328 + $0x50] sm:$0xff] %v2596
        %2615 = vst [vmem:[%s328 + $0x58] sm:$0xff] %v2597
        %2616 = vst [vmem:[%s328 + $0x60] sm:$0xff] %v2598
        %2617 = vst [vmem:[%s328 + $0x68] sm:$0xff] %v2599
        %2618 = vst [vmem:[%s328 + $0x70] sm:$0xff] %v2600
        %2619 = vst [vmem:[%s328 + $0x78] sm:$0xff] %v2601
        %2620 = vst [vmem:[%s328 + $0x80] sm:$0xff] %v2602
        %2621 = vst [vmem:[%s328 + $0x88] sm:$0xff] %v2603
        %s2622 = sand.u32 %s167, 1
        %s2623 = scalar_lea.sflag [#allocation4], %s2622
        %s2624 = sand.u32 %s167, 1
        %s2625 = smul.addr %s2624, 144
        %s2626 = scalar_lea.vmem [#allocation8], %s2625
        // Predicated region
        $region49: #{tpu_custom_call.1} parent=35 // pred_check
          %p2627 = pneg %p177
        $region50: #{tpu_custom_call.1} parent=35 // pred_check_branch
          %2629 = sbr.rel (%p2627) target = $region52
        $region51: #{tpu_custom_call.1} parent=35 // pred_region
          %s2630 = smul.u32 18, %s31
          %s2632 = ssub.s32 2304, 2304
          %2633 = vsyncadd %s2623, %s2632
          %s2634 = smul.addr %s30, 18
          %s2635 = sadd.s32 %s2630, %s2634
          %s2636 = smul.addr %s29, 18
          %s2637 = sadd.s32 %s2635, %s2636
          %s2638 = smul.addr %s2637, 128
          %s2639 = scalar_lea.hbm %s4, %s2638
          %s2641 = sshll.u32 %s2626, 4
          %s2642 = int_to_ptr.vmem [resolvable:$true] %s2641
          %2644 = dma.vmem_to_hbm [thread:$0]  %s2642, 2304, %s2639, %s2623
        $region52: #{tpu_custom_call.1} parent=35 // pred_fallthru
          _
      $region36: #{tpu_custom_call.1} parent=5 // pred_fallthru
        _
      %p2645 = scmp.le.s32.totalorder 2, %s19
      // Predicated region
      $region53: #{tpu_custom_call.1} parent=5 // pred_check
        %p2646 = pneg %p2645
      $region54: #{tpu_custom_call.1} parent=5 // pred_check_branch
        %2648 = sbr.rel (%p2646) target = $region56
      $region55: #{tpu_custom_call.1} parent=5 // pred_region
        %s2649 = ssub.s32 %s19, 2
        // Predicated region
        $region57: #{tpu_custom_call.1} parent=55 // pred_check
          %p2650 = pneg %p183
        $region58: #{tpu_custom_call.1} parent=55 // pred_check_branch
          %2652 = sbr.rel (%p2650) target = $region60
        $region59: #{tpu_custom_call.1} parent=55 // pred_region
          %s2653 = sand.u32 %s168, 1
          %s2654 = scalar_lea.sflag [#allocation4], %s2653
          %s2655 = sand.u32 %s168, 1
          %s2656 = smul.addr %s2655, 144
          %s2657 = scalar_lea.vmem [#allocation8], %s2656
          %2658 = dma.done %s2654, 2304
        $region60: #{tpu_custom_call.1} parent=55 // pred_fallthru
          _
      $region56: #{tpu_custom_call.1} parent=5 // pred_fallthru
        _
    $region6: #{tpu_custom_call.1} parent=1 // loop_footer
      %s23 = sadd.s32 1, %s19
    $region7: #{tpu_custom_call.1} parent=1 // loop_footer_branch
      %18 = sbr.rel target = $region3
    $region8: #{tpu_custom_call.1} parent=1 // loop_exit
      _
    %2659 = vsyncpa [#allocation3], 1
    %s2660 = scalar_lea.sflag [#allocation3], 1
    %2661 = vsyncpa %s2660, 1
    %2662 = vsyncpa [#allocation6], 1
    %s2663 = scalar_lea.sflag [#allocation6], 1
    %2664 = vsyncpa %s2663, 1
    %2665 = vsyncpa [#allocation4], 1
    %s2666 = scalar_lea.sflag [#allocation4], 1
    %2667 = vsyncpa %s2666, 1

</llo_original>
